<compile_context>
chip_gen: v7x
topology: tpu7x:2x2x1
jax: 0.10.0
libtpu: 0.0.40
codegen_flags: <defaults>
</compile_context>

<pallas_src>
import jax
import jax.numpy as jnp
from jax.experimental import pallas as pl
from jax.experimental.pallas import tpu as pltpu


def _round_up(n, m):
    return ((n + m - 1) // m) * m


def _choose_tm(batch, block_rows):
    """Batch tile size: multiple of 16, capped at block_rows, >= 2 grid steps when B > 16."""
    block_rows = max(16, (block_rows // 16) * 16)
    if batch > 16:
        tm = _round_up(pl.cdiv(batch, 2), 16)   # guarantees num_tiles >= 2
    else:
        tm = _round_up(batch, 16)
    return min(block_rows, tm)


def sae_kernel(x_ref,
               we0_ref, be0_ref, we1_ref, be1_ref,
               wd0_ref, bd0_ref, wd1_ref, bd1_ref,
               out_ref, enc_ref):
    cdt = we0_ref.dtype  # MXU operand dtype (bf16 when params come from prepare_params)
    # x arrives as f32; cast inside the kernel instead of materializing a bf16 copy in HBM.
    x = x_ref[...].astype(cdt)

    # Encoder: Linear -> ReLU, Linear -> ReLU.  bf16 operands, f32 MXU accumulation,
    # bias add + ReLU in f32 (v5e VPU has no bf16 path).
    h = jnp.dot(x, we0_ref[...], preferred_element_type=jnp.float32) + be0_ref[...]
    h = jnp.maximum(h, 0.0)
    h = jnp.dot(h.astype(cdt), we1_ref[...],
                preferred_element_type=jnp.float32) + be1_ref[...]
    h = jnp.maximum(h, 0.0)
    enc_ref[...] = h.astype(enc_ref.dtype)

    # Decoder: Linear -> ReLU, final Linear (no activation).
    d = jnp.dot(h.astype(cdt), wd0_ref[...],
                preferred_element_type=jnp.float32) + bd0_ref[...]
    d = jnp.maximum(d, 0.0)
    o = jnp.dot(d.astype(cdt), wd1_ref[...],
                preferred_element_type=jnp.float32) + bd1_ref[...]
    out_ref[...] = o.astype(out_ref.dtype)


def prepare_params(params, compute_dtype=jnp.bfloat16):
    """One-time cast (at init, NOT per forward call): weights -> compute_dtype for the
    MXU, biases -> f32 [1, out] for the VPU add."""
    return tuple((w.astype(compute_dtype), b.reshape(1, -1).astype(jnp.float32))
                 for (w, b) in params)


def sparse_autoencoder_forward(x, prepared_params, *, block_rows=1024,
                               out_dtype=jnp.float32, enc_dtype=jnp.float32,
                               vmem_limit_bytes=64 << 20):
    """x: [B, C, H, W] (NCHW, like the PyTorch module). Returns (out, encoder)."""
    B = x.shape[0]
    x2d = x.reshape(B, -1).astype(jnp.float32)   # x.view(x.size(0), -1); stays f32

    (we0, be0), (we1, be1), (wd0, bd0), (wd1, bd1) = prepared_params
    in_dim = we0.shape[0]
    h0_dim = we0.shape[1]
    enc_dim = we1.shape[1]
    d0_dim = wd0.shape[1]
    out_dim = wd1.shape[1]

    TM = _choose_tm(B, block_rows)
    B_pad = _round_up(B, TM)
    if B_pad != B:
        x2d = jnp.pad(x2d, ((0, B_pad - B), (0, 0)))
    num_tiles = B_pad // TM

    def tile_spec(dim):        # activation tiles: march over the batch axis
        return pl.BlockSpec((TM, dim), lambda i: (i, 0))

    def resident_spec(shape):  # weights / biases: constant index_map -> VMEM resident
        return pl.BlockSpec(shape, lambda i: (0, 0))

    flops = 2 * B_pad * (in_dim * h0_dim + h0_dim * enc_dim
                         + enc_dim * d0_dim + d0_dim * out_dim)
    bytes_accessed = (
        B_pad * in_dim * 4                                                    # x (f32)
        + sum(int(w.size) * w.dtype.itemsize + int(b.size) * b.dtype.itemsize
              for (w, b) in prepared_params)                                  # weights/biases
        + B_pad * out_dim * jnp.dtype(out_dtype).itemsize                     # out
        + B_pad * enc_dim * jnp.dtype(enc_dtype).itemsize)                    # enc

    out, enc = pl.pallas_call(
        sae_kernel,
        out_shape=(
            jax.ShapeDtypeStruct((B_pad, out_dim), out_dtype),
            jax.ShapeDtypeStruct((B_pad, enc_dim), enc_dtype),
        ),
        grid=(num_tiles,),
        in_specs=[
            tile_spec(in_dim),
            resident_spec(we0.shape), resident_spec(be0.shape),
            resident_spec(we1.shape), resident_spec(be1.shape),
            resident_spec(wd0.shape), resident_spec(bd0.shape),
            resident_spec(wd1.shape), resident_spec(bd1.shape),
        ],
        out_specs=(tile_spec(out_dim), tile_spec(enc_dim)),
        compiler_params=pltpu.CompilerParams(
            dimension_semantics=("parallel",),
            vmem_limit_bytes=vmem_limit_bytes),
        cost_estimate=pl.CostEstimate(
            flops=flops, transcendentals=0, bytes_accessed=bytes_accessed),
    )(x2d, we0, be0, we1, be1, wd0, bd0, wd1, bd1)

    return out[:B], enc[:B]


def init_params(key, in_dim, encoder_channels, decoder_channels):
    """Deterministic Linear params (f32, like the PyTorch module); weights [in, out], biases [1, out]."""
    dims = []
    d = in_dim
    for h in encoder_channels:
        dims.append((d, h)); d = h
    for h in decoder_channels:
        dims.append((d, h)); d = h
    params = []
    for (din, dout) in dims:
        key, kw, kb = jax.random.split(key, 3)
        bound = 1.0 / (din ** 0.5)  # PyTorch Linear default init range
        w = jax.random.uniform(kw, (din, dout), jnp.float32, -bound, bound)
        b = jax.random.uniform(kb, (1, dout), jnp.float32, -bound, bound)
        params.append((w, b))
    return params


def reference_forward(x, params, compute_dtype=jnp.bfloat16):
    """Pure-JAX reference using the same bf16-operand / f32-accumulation recipe."""
    B = x.shape[0]
    h = x.reshape(B, -1)
    (we0, be0), (we1, be1), (wd0, bd0), (wd1, bd1) = params

    def lin(a, w, b):
        return jnp.dot(a.astype(compute_dtype), w.astype(compute_dtype),
                       preferred_element_type=jnp.float32) + b

    h = jnp.maximum(lin(h, we0, be0), 0.0)
    h = jnp.maximum(lin(h, we1, be1), 0.0)
    enc = h
    d = jnp.maximum(lin(h, wd0, bd0), 0.0)
    out = lin(d, wd1, bd1)
    return out, enc


if __name__ == "__main__":
    key = jax.random.PRNGKey(0)
    kx, kp = jax.random.split(key)

    # Small, module-consistent shapes: x is NCHW, flattened dim = 4*16*16 = 1024.
    B, C, H, W = 2, 4, 16, 16
    in_dim = C * H * W
    encoder_channels = [256, 128]
    decoder_channels = [256, in_dim]

    x = jax.random.normal(kx, (B, C, H, W), jnp.float32)
    params = init_params(kp, in_dim, encoder_channels, decoder_channels)
    prepared = prepare_params(params)          # one-time bf16 weight cast (not per call)

    fwd = jax.jit(sparse_autoencoder_forward)  # fuses pad / final slice around the kernel
    out, enc = fwd(x, prepared)
    out = jax.block_until_ready(out)
    enc = jax.block_until_ready(enc)

    # Verify against a pure-JAX reference using the same precision recipe.
    ref_out, ref_enc = reference_forward(x, params)
    assert out.shape == (B, in_dim) and enc.shape == (B, encoder_channels[-1])
    assert out.dtype == jnp.float32 and enc.dtype == jnp.float32
    assert jnp.allclose(out, ref_out, atol=1e-2, rtol=1e-2)
    assert jnp.allclose(enc, ref_enc, atol=1e-2, rtol=1e-2)

    # Low-HBM-traffic variant: bf16 out/enc writeback (halves the dominant output stream).
    out_bf, enc_bf = sparse_autoencoder_forward(
        x, prepared, out_dtype=jnp.bfloat16, enc_dtype=jnp.bfloat16)
    out_bf = jax.block_until_ready(out_bf)
    enc_bf = jax.block_until_ready(enc_bf)
    assert jnp.allclose(out_bf.astype(jnp.float32), ref_out, atol=5e-2, rtol=5e-2)
    assert jnp.allclose(enc_bf.astype(jnp.float32), ref_enc, atol=5e-2, rtol=5e-2)

    print("KERNEL_OK")
</pallas_src>

<mosaic_0001>
module attributes {stable_mosaic.version = 11 : i64} {
  func.func @sae_kernel(%arg0: i32, %arg1: memref<16x1024xf32, #tpu.memory_space<vmem>>, %arg2: memref<1024x256xbf16, #tpu.memory_space<vmem>>, %arg3: memref<1x256xf32, #tpu.memory_space<vmem>>, %arg4: memref<256x128xbf16, #tpu.memory_space<vmem>>, %arg5: memref<1x128xf32, #tpu.memory_space<vmem>>, %arg6: memref<128x256xbf16, #tpu.memory_space<vmem>>, %arg7: memref<1x256xf32, #tpu.memory_space<vmem>>, %arg8: memref<256x1024xbf16, #tpu.memory_space<vmem>>, %arg9: memref<1x1024xf32, #tpu.memory_space<vmem>>, %arg10: memref<16x1024xf32, #tpu.memory_space<vmem>>, %arg11: memref<16x128xf32, #tpu.memory_space<vmem>>) attributes {dimension_semantics = [#tpu.dimension_semantics<parallel>], iteration_bounds = array<i64: 1>, scalar_prefetch = 0 : i64, scratch_operands = 0 : i64, tpu.core_type = #tpu.core_type<tc>, window_params = [{transform_indices = @transform_0, window_bounds = array<i64: 16, 1024>}, {pipeline_mode = #tpu.pipeline_mode<synchronous>, transform_indices = @transform_1, window_bounds = array<i64: 1024, 256>}, {pipeline_mode = #tpu.pipeline_mode<synchronous>, transform_indices = @transform_2, window_bounds = array<i64: 1, 256>}, {pipeline_mode = #tpu.pipeline_mode<synchronous>, transform_indices = @transform_3, window_bounds = array<i64: 256, 128>}, {pipeline_mode = #tpu.pipeline_mode<synchronous>, transform_indices = @transform_4, window_bounds = array<i64: 1, 128>}, {pipeline_mode = #tpu.pipeline_mode<synchronous>, transform_indices = @transform_5, window_bounds = array<i64: 128, 256>}, {pipeline_mode = #tpu.pipeline_mode<synchronous>, transform_indices = @transform_6, window_bounds = array<i64: 1, 256>}, {pipeline_mode = #tpu.pipeline_mode<synchronous>, transform_indices = @transform_7, window_bounds = array<i64: 256, 1024>}, {pipeline_mode = #tpu.pipeline_mode<synchronous>, transform_indices = @transform_8, window_bounds = array<i64: 1, 1024>}, {transform_indices = @transform_9, window_bounds = array<i64: 16, 1024>}, {transform_indices = @transform_10, window_bounds = array<i64: 16, 128>}]} {
    %c0 = arith.constant 0 : index
    %c0_0 = arith.constant 0 : index
    %0 = vector.load %arg1[%c0, %c0_0] : memref<16x1024xf32, #tpu.memory_space<vmem>>, vector<16x1024xf32>
    %1 = arith.truncf %0 : vector<16x1024xf32> to vector<16x1024xbf16>
    %c0_1 = arith.constant 0 : index
    %c0_2 = arith.constant 0 : index
    %2 = vector.load %arg2[%c0_1, %c0_2] : memref<1024x256xbf16, #tpu.memory_space<vmem>>, vector<1024x256xbf16>
    %cst = arith.constant dense<0.000000e+00> : vector<16x256xf32>
    %3 = tpu.matmul %1, %2, %cst {dimension_numbers = #tpu.dot_dimension_numbers<[1], [0], [0], [1], [0, 0, 1, 1], [], []>} : vector<16x1024xbf16>, vector<1024x256xbf16>, vector<16x256xf32> -> vector<16x256xf32>
    %c0_3 = arith.constant 0 : index
    %c0_4 = arith.constant 0 : index
    %4 = vector.load %arg3[%c0_3, %c0_4] : memref<1x256xf32, #tpu.memory_space<vmem>>, vector<1x256xf32>
    %5 = vector.broadcast %4 : vector<1x256xf32> to vector<16x256xf32>
    %6 = arith.addf %3, %5 : vector<16x256xf32>
    %cst_5 = arith.constant 0.000000e+00 : f32
    %7 = vector.broadcast %cst_5 : f32 to vector<16x256xf32>
    %8 = arith.maximumf %6, %7 : vector<16x256xf32>
    %9 = arith.truncf %8 : vector<16x256xf32> to vector<16x256xbf16>
    %c0_6 = arith.constant 0 : index
    %c0_7 = arith.constant 0 : index
    %10 = vector.load %arg4[%c0_6, %c0_7] : memref<256x128xbf16, #tpu.memory_space<vmem>>, vector<256x128xbf16>
    %cst_8 = arith.constant dense<0.000000e+00> : vector<16x128xf32>
    %11 = tpu.matmul %9, %10, %cst_8 {dimension_numbers = #tpu.dot_dimension_numbers<[1], [0], [0], [1], [0, 0, 1, 1], [], []>} : vector<16x256xbf16>, vector<256x128xbf16>, vector<16x128xf32> -> vector<16x128xf32>
    %c0_9 = arith.constant 0 : index
    %c0_10 = arith.constant 0 : index
    %12 = vector.load %arg5[%c0_9, %c0_10] : memref<1x128xf32, #tpu.memory_space<vmem>>, vector<1x128xf32>
    %13 = vector.broadcast %12 : vector<1x128xf32> to vector<16x128xf32>
    %14 = arith.addf %11, %13 : vector<16x128xf32>
    %cst_11 = arith.constant 0.000000e+00 : f32
    %15 = vector.broadcast %cst_11 : f32 to vector<16x128xf32>
    %16 = arith.maximumf %14, %15 : vector<16x128xf32>
    %c0_12 = arith.constant 0 : index
    %c0_13 = arith.constant 0 : index
    %17 = vector.load %arg11[%c0_12, %c0_13] : memref<16x128xf32, #tpu.memory_space<vmem>>, vector<16x128xf32>
    tpu.vector_store %arg11[%c0_12, %c0_13], %16 {strides = array<i32>} : memref<16x128xf32, #tpu.memory_space<vmem>>, vector<16x128xf32>,
    %18 = arith.truncf %16 : vector<16x128xf32> to vector<16x128xbf16>
    %c0_14 = arith.constant 0 : index
    %c0_15 = arith.constant 0 : index
    %19 = vector.load %arg6[%c0_14, %c0_15] : memref<128x256xbf16, #tpu.memory_space<vmem>>, vector<128x256xbf16>
    %cst_16 = arith.constant dense<0.000000e+00> : vector<16x256xf32>
    %20 = tpu.matmul %18, %19, %cst_16 {dimension_numbers = #tpu.dot_dimension_numbers<[1], [0], [0], [1], [0, 0, 1, 1], [], []>} : vector<16x128xbf16>, vector<128x256xbf16>, vector<16x256xf32> -> vector<16x256xf32>
    %c0_17 = arith.constant 0 : index
    %c0_18 = arith.constant 0 : index
    %21 = vector.load %arg7[%c0_17, %c0_18] : memref<1x256xf32, #tpu.memory_space<vmem>>, vector<1x256xf32>
    %22 = vector.broadcast %21 : vector<1x256xf32> to vector<16x256xf32>
    %23 = arith.addf %20, %22 : vector<16x256xf32>
    %cst_19 = arith.constant 0.000000e+00 : f32
    %24 = vector.broadcast %cst_19 : f32 to vector<16x256xf32>
    %25 = arith.maximumf %23, %24 : vector<16x256xf32>
    %26 = arith.truncf %25 : vector<16x256xf32> to vector<16x256xbf16>
    %c0_20 = arith.constant 0 : index
    %c0_21 = arith.constant 0 : index
    %27 = vector.load %arg8[%c0_20, %c0_21] : memref<256x1024xbf16, #tpu.memory_space<vmem>>, vector<256x1024xbf16>
    %cst_22 = arith.constant dense<0.000000e+00> : vector<16x1024xf32>
    %28 = tpu.matmul %26, %27, %cst_22 {dimension_numbers = #tpu.dot_dimension_numbers<[1], [0], [0], [1], [0, 0, 1, 1], [], []>} : vector<16x256xbf16>, vector<256x1024xbf16>, vector<16x1024xf32> -> vector<16x1024xf32>
    %c0_23 = arith.constant 0 : index
    %c0_24 = arith.constant 0 : index
    %29 = vector.load %arg9[%c0_23, %c0_24] : memref<1x1024xf32, #tpu.memory_space<vmem>>, vector<1x1024xf32>
    %30 = vector.broadcast %29 : vector<1x1024xf32> to vector<16x1024xf32>
    %31 = arith.addf %28, %30 : vector<16x1024xf32>
    %c0_25 = arith.constant 0 : index
    %c0_26 = arith.constant 0 : index
    %32 = vector.load %arg10[%c0_25, %c0_26] : memref<16x1024xf32, #tpu.memory_space<vmem>>, vector<16x1024xf32>
    tpu.vector_store %arg10[%c0_25, %c0_26], %31 {strides = array<i32>} : memref<16x1024xf32, #tpu.memory_space<vmem>>, vector<16x1024xf32>,
    return
  }
  func.func @transform_0(%arg0: i32) -> (i32, i32) {
    %c0_i32 = arith.constant 0 : i32
    %c0_i32_0 = arith.constant 0 : i32
    return %arg0, %c0_i32 : i32, i32
  }
  func.func @transform_1(%arg0: i32) -> (i32, i32) {
    %c0_i32 = arith.constant 0 : i32
    %c0_i32_0 = arith.constant 0 : i32
    %c0_i32_1 = arith.constant 0 : i32
    return %c0_i32, %c0_i32_0 : i32, i32
  }
  func.func @transform_2(%arg0: i32) -> (i32, i32) {
    %c0_i32 = arith.constant 0 : i32
    %c0_i32_0 = arith.constant 0 : i32
    %c0_i32_1 = arith.constant 0 : i32
    return %c0_i32, %c0_i32_0 : i32, i32
  }
  func.func @transform_3(%arg0: i32) -> (i32, i32) {
    %c0_i32 = arith.constant 0 : i32
    %c0_i32_0 = arith.constant 0 : i32
    %c0_i32_1 = arith.constant 0 : i32
    return %c0_i32, %c0_i32_0 : i32, i32
  }
  func.func @transform_4(%arg0: i32) -> (i32, i32) {
    %c0_i32 = arith.constant 0 : i32
    %c0_i32_0 = arith.constant 0 : i32
    %c0_i32_1 = arith.constant 0 : i32
    return %c0_i32, %c0_i32_0 : i32, i32
  }
  func.func @transform_5(%arg0: i32) -> (i32, i32) {
    %c0_i32 = arith.constant 0 : i32
    %c0_i32_0 = arith.constant 0 : i32
    %c0_i32_1 = arith.constant 0 : i32
    return %c0_i32, %c0_i32_0 : i32, i32
  }
  func.func @transform_6(%arg0: i32) -> (i32, i32) {
    %c0_i32 = arith.constant 0 : i32
    %c0_i32_0 = arith.constant 0 : i32
    %c0_i32_1 = arith.constant 0 : i32
    return %c0_i32, %c0_i32_0 : i32, i32
  }
  func.func @transform_7(%arg0: i32) -> (i32, i32) {
    %c0_i32 = arith.constant 0 : i32
    %c0_i32_0 = arith.constant 0 : i32
    %c0_i32_1 = arith.constant 0 : i32
    return %c0_i32, %c0_i32_0 : i32, i32
  }
  func.func @transform_8(%arg0: i32) -> (i32, i32) {
    %c0_i32 = arith.constant 0 : i32
    %c0_i32_0 = arith.constant 0 : i32
    %c0_i32_1 = arith.constant 0 : i32
    return %c0_i32, %c0_i32_0 : i32, i32
  }
  func.func @transform_9(%arg0: i32) -> (i32, i32) {
    %c0_i32 = arith.constant 0 : i32
    %c0_i32_0 = arith.constant 0 : i32
    return %arg0, %c0_i32 : i32, i32
  }
  func.func @transform_10(%arg0: i32) -> (i32, i32) {
    %c0_i32 = arith.constant 0 : i32
    %c0_i32_0 = arith.constant 0 : i32
    return %arg0, %c0_i32 : i32, i32
  }
}

</mosaic_0001>

<llo_original>
// kernel: sparse_autoencoder_forward.1
$region0: #{sparse_autoencoder_forward.1}
  #allocation0 [shape = 'u32[]', space=smem, size = 0x4, offset = 0x4, fixed_abs, tag = 'smem constant byte address 0x4 - core index']
  #allocation1 [shape = 'u32[144,128]{1,0:T(1,128)}', space=vmem, size = 0x12000, scoped, tag = 'internal scratch']
  %s0 = inlined_call_operand.hbm [shape: f32[16,1024], index: 0, kind: input, shape index: {}]
  %s1 = inlined_call_operand.hbm [shape: bf16[1024,256], index: 1, kind: input, shape index: {}]
  %s2 = inlined_call_operand.hbm [shape: f32[1,256], index: 2, kind: input, shape index: {}]
  %s3 = inlined_call_operand.hbm [shape: bf16[256,128], index: 3, kind: input, shape index: {}]
  %s4 = inlined_call_operand.hbm [shape: f32[1,128], index: 4, kind: input, shape index: {}]
  %s5 = inlined_call_operand.hbm [shape: bf16[128,256], index: 5, kind: input, shape index: {}]
  %s6 = inlined_call_operand.hbm [shape: f32[1,256], index: 6, kind: input, shape index: {}]
  %s7 = inlined_call_operand.hbm [shape: bf16[256,1024], index: 7, kind: input, shape index: {}]
  %s8 = inlined_call_operand.hbm [shape: f32[1,1024], index: 8, kind: input, shape index: {}]
  %s9 = inlined_call_operand.hbm [shape: f32[16,1024], index: 9, kind: output, shape index: {0}]
  %s10 = inlined_call_operand.hbm [shape: f32[16,128], index: 10, kind: output, shape index: {1}]
  %11 = xla_tuple %s9, %s10
  %s12 = sld [smem:[#allocation0]]
  $region90: #{sparse_autoencoder_forward.1} parent=0
    _
  %s14 = ssub.s32 1, %s12
  %s15 = scalar_select 0, %s14, %s12
  $region1: #{sparse_autoencoder_forward.1} parent=0
    #allocation2 [shape = 'u8[65536]{0}', space=vmem, size = 0x10000, scoped, tag = 'input window, operand 0, single buffered']
    #allocation3 [shape = 's32[1]{0}', space=sflag, size = 0x4, scoped, tag = 'scoped memory for sparse_autoencoder_forward.1']
    #allocation4 [shape = 's32[1]{0}', space=sflag, size = 0x4, scoped, tag = 'scoped memory for sparse_autoencoder_forward.1']
    #allocation5 [shape = 'u8[524288]{0}', space=vmem, size = 0x80000, scoped, tag = 'input window, operand 1, single buffered']
    #allocation6 [shape = 's32[1]{0}', space=sflag, size = 0x4, scoped, tag = 'scoped memory for sparse_autoencoder_forward.1']
    #allocation7 [shape = 'u8[1024]{0}', space=vmem, size = 0x400, scoped, tag = 'input window, operand 2, single buffered']
    #allocation8 [shape = 'u8[65536]{0}', space=vmem, size = 0x10000, scoped, tag = 'input window, operand 3, single buffered']
    #allocation9 [shape = 's32[1]{0}', space=sflag, size = 0x4, scoped, tag = 'scoped memory for sparse_autoencoder_forward.1']
    #allocation10 [shape = 'u8[512]{0}', space=vmem, size = 0x400, scoped, tag = 'input window, operand 4, single buffered']
    #allocation11 [shape = 'u8[65536]{0}', space=vmem, size = 0x10000, scoped, tag = 'input window, operand 5, single buffered']
    #allocation12 [shape = 's32[1]{0}', space=sflag, size = 0x4, scoped, tag = 'scoped memory for sparse_autoencoder_forward.1']
    #allocation13 [shape = 'u8[1024]{0}', space=vmem, size = 0x400, scoped, tag = 'input window, operand 6, single buffered']
    #allocation14 [shape = 'u8[524288]{0}', space=vmem, size = 0x80000, scoped, tag = 'input window, operand 7, single buffered']
    #allocation15 [shape = 's32[1]{0}', space=sflag, size = 0x4, scoped, tag = 'scoped memory for sparse_autoencoder_forward.1']
    #allocation16 [shape = 'u8[4096]{0}', space=vmem, size = 0x1000, scoped, tag = 'input window, operand 8, single buffered']
    #allocation17 [shape = 'u8[65536]{0}', space=vmem, size = 0x10000, scoped, tag = 'output window, operand 0, single buffered']
    #allocation18 [shape = 'u8[8192]{0}', space=vmem, size = 0x2000, scoped, tag = 'output window, operand 1, single buffered']
    #allocation19 [shape = 's32[1]{0}', space=sflag, size = 0x4, scoped, tag = 'scoped memory for sparse_autoencoder_forward.1']
    %16 = vsyncpa [#allocation3], 0
    %17 = vsyncpa [#allocation6], 0
    %18 = vsyncpa [#allocation9], 0
    %19 = vsyncpa [#allocation12], 0
    %20 = vsyncpa [#allocation15], 0
    %21 = vsyncpa [#allocation4], 0
    %22 = vsyncpa [#allocation19], 0
    // Predicated region
    $region2: #{sparse_autoencoder_forward.1} parent=1 // pred_check
      _
    $region3: #{sparse_autoencoder_forward.1} parent=1 // pred_check_branch
      %24 = sbr.rel (0) target = $region5
    $region4: #{sparse_autoencoder_forward.1} parent=1 // pred_region
      %s26 = ssub.s32 2048, 2048
      %27 = vsyncadd [#allocation3], %s26
      %s28 = sshll.u32 [#allocation2], 4
      %s29 = int_to_ptr.vmem [resolvable:$true] %s28
      %34 = dma.hbm_to_vmem [thread:$0]  %s0, 2048, %s29, [#allocation3], 1024, 1024, 64
    $region5: #{sparse_autoencoder_forward.1} parent=1 // pred_fallthru
      _
    // Predicated region
    $region6: #{sparse_autoencoder_forward.1} parent=1 // pred_check
      _
    $region7: #{sparse_autoencoder_forward.1} parent=1 // pred_check_branch
      %36 = sbr.rel (0) target = $region9
    $region8: #{sparse_autoencoder_forward.1} parent=1 // pred_region
      %s38 = ssub.s32 16384, 16384
      %39 = vsyncadd [#allocation6], %s38
      %s40 = sshll.u32 [#allocation5], 4
      %s41 = int_to_ptr.vmem [resolvable:$true] %s40
      %46 = dma.hbm_to_vmem [thread:$0]  %s1, 16384, %s41, [#allocation6], 128, 128, 8
    $region9: #{sparse_autoencoder_forward.1} parent=1 // pred_fallthru
      _
    // Predicated region
    $region10: #{sparse_autoencoder_forward.1} parent=1 // pred_check
      _
    $region11: #{sparse_autoencoder_forward.1} parent=1 // pred_check_branch
      %48 = sbr.rel (0) target = $region13
    $region12: #{sparse_autoencoder_forward.1} parent=1 // pred_region
      %s50 = ssub.s32 32, 32
      %51 = vsyncadd [#allocation6], %s50
      %s53 = sshll.u32 [#allocation7], 4
      %s54 = int_to_ptr.vmem [resolvable:$true] %s53
      %56 = dma.hbm_to_vmem [thread:$0]  %s2, 32, %s54, [#allocation6]
    $region13: #{sparse_autoencoder_forward.1} parent=1 // pred_fallthru
      _
    // Predicated region
    $region14: #{sparse_autoencoder_forward.1} parent=1 // pred_check
      _
    $region15: #{sparse_autoencoder_forward.1} parent=1 // pred_check_branch
      %58 = sbr.rel (0) target = $region17
    $region16: #{sparse_autoencoder_forward.1} parent=1 // pred_region
      %s60 = ssub.s32 2048, 2048
      %61 = vsyncadd [#allocation9], %s60
      %s62 = sshll.u32 [#allocation8], 4
      %s63 = int_to_ptr.vmem [resolvable:$true] %s62
      %68 = dma.hbm_to_vmem [thread:$0]  %s3, 2048, %s63, [#allocation9], 64, 64, 4
    $region17: #{sparse_autoencoder_forward.1} parent=1 // pred_fallthru
      _
    // Predicated region
    $region18: #{sparse_autoencoder_forward.1} parent=1 // pred_check
      _
    $region19: #{sparse_autoencoder_forward.1} parent=1 // pred_check_branch
      %70 = sbr.rel (0) target = $region21
    $region20: #{sparse_autoencoder_forward.1} parent=1 // pred_region
      %s72 = ssub.s32 16, 16
      %73 = vsyncadd [#allocation9], %s72
      %s75 = sshll.u32 [#allocation10], 4
      %s76 = int_to_ptr.vmem [resolvable:$true] %s75
      %78 = dma.hbm_to_vmem [thread:$0]  %s4, 16, %s76, [#allocation9]
    $region21: #{sparse_autoencoder_forward.1} parent=1 // pred_fallthru
      _
    // Predicated region
    $region22: #{sparse_autoencoder_forward.1} parent=1 // pred_check
      _
    $region23: #{sparse_autoencoder_forward.1} parent=1 // pred_check_branch
      %80 = sbr.rel (0) target = $region25
    $region24: #{sparse_autoencoder_forward.1} parent=1 // pred_region
      %s82 = ssub.s32 2048, 2048
      %83 = vsyncadd [#allocation12], %s82
      %s84 = sshll.u32 [#allocation11], 4
      %s85 = int_to_ptr.vmem [resolvable:$true] %s84
      %90 = dma.hbm_to_vmem [thread:$0]  %s5, 2048, %s85, [#allocation12], 128, 128, 8
    $region25: #{sparse_autoencoder_forward.1} parent=1 // pred_fallthru
      _
    // Predicated region
    $region26: #{sparse_autoencoder_forward.1} parent=1 // pred_check
      _
    $region27: #{sparse_autoencoder_forward.1} parent=1 // pred_check_branch
      %92 = sbr.rel (0) target = $region29
    $region28: #{sparse_autoencoder_forward.1} parent=1 // pred_region
      %s94 = ssub.s32 32, 32
      %95 = vsyncadd [#allocation12], %s94
      %s97 = sshll.u32 [#allocation13], 4
      %s98 = int_to_ptr.vmem [resolvable:$true] %s97
      %100 = dma.hbm_to_vmem [thread:$0]  %s6, 32, %s98, [#allocation12]
    $region29: #{sparse_autoencoder_forward.1} parent=1 // pred_fallthru
      _
    // Predicated region
    $region30: #{sparse_autoencoder_forward.1} parent=1 // pred_check
      _
    $region31: #{sparse_autoencoder_forward.1} parent=1 // pred_check_branch
      %102 = sbr.rel (0) target = $region33
    $region32: #{sparse_autoencoder_forward.1} parent=1 // pred_region
      %s104 = ssub.s32 16384, 16384
      %105 = vsyncadd [#allocation15], %s104
      %s106 = sshll.u32 [#allocation14], 4
      %s107 = int_to_ptr.vmem [resolvable:$true] %s106
      %112 = dma.hbm_to_vmem [thread:$0]  %s7, 16384, %s107, [#allocation15], 512, 512, 32
    $region33: #{sparse_autoencoder_forward.1} parent=1 // pred_fallthru
      _
    // Predicated region
    $region34: #{sparse_autoencoder_forward.1} parent=1 // pred_check
      _
    $region35: #{sparse_autoencoder_forward.1} parent=1 // pred_check_branch
      %114 = sbr.rel (0) target = $region37
    $region36: #{sparse_autoencoder_forward.1} parent=1 // pred_region
      %s116 = ssub.s32 128, 128
      %117 = vsyncadd [#allocation15], %s116
      %s119 = sshll.u32 [#allocation16], 4
      %s120 = int_to_ptr.vmem [resolvable:$true] %s119
      %122 = dma.hbm_to_vmem [thread:$0]  %s8, 128, %s120, [#allocation15]
    $region37: #{sparse_autoencoder_forward.1} parent=1 // pred_fallthru
      _
    // Predicated region
    $region38: #{sparse_autoencoder_forward.1} parent=1 // pred_check
      _
    $region39: #{sparse_autoencoder_forward.1} parent=1 // pred_check_branch
      %124 = sbr.rel (0) target = $region41
    $region40: #{sparse_autoencoder_forward.1} parent=1 // pred_region
      %125 = dma.done [#allocation3], 2048
    $region41: #{sparse_autoencoder_forward.1} parent=1 // pred_fallthru
      _
    // Predicated region
    $region42: #{sparse_autoencoder_forward.1} parent=1 // pred_check
      _
    $region43: #{sparse_autoencoder_forward.1} parent=1 // pred_check_branch
      %127 = sbr.rel (0) target = $region45
    $region44: #{sparse_autoencoder_forward.1} parent=1 // pred_region
      %128 = dma.done [#allocation6], 16384
    $region45: #{sparse_autoencoder_forward.1} parent=1 // pred_fallthru
      _
    // Predicated region
    $region46: #{sparse_autoencoder_forward.1} parent=1 // pred_check
      _
    $region47: #{sparse_autoencoder_forward.1} parent=1 // pred_check_branch
      %130 = sbr.rel (0) target = $region49
    $region48: #{sparse_autoencoder_forward.1} parent=1 // pred_region
      %131 = dma.done [#allocation6], 32
    $region49: #{sparse_autoencoder_forward.1} parent=1 // pred_fallthru
      _
    // Predicated region
    $region50: #{sparse_autoencoder_forward.1} parent=1 // pred_check
      _
    $region51: #{sparse_autoencoder_forward.1} parent=1 // pred_check_branch
      %133 = sbr.rel (0) target = $region53
    $region52: #{sparse_autoencoder_forward.1} parent=1 // pred_region
      %134 = dma.done [#allocation9], 2048
    $region53: #{sparse_autoencoder_forward.1} parent=1 // pred_fallthru
      _
    // Predicated region
    $region54: #{sparse_autoencoder_forward.1} parent=1 // pred_check
      _
    $region55: #{sparse_autoencoder_forward.1} parent=1 // pred_check_branch
      %136 = sbr.rel (0) target = $region57
    $region56: #{sparse_autoencoder_forward.1} parent=1 // pred_region
      %137 = dma.done [#allocation9], 16
    $region57: #{sparse_autoencoder_forward.1} parent=1 // pred_fallthru
      _
    // Predicated region
    $region58: #{sparse_autoencoder_forward.1} parent=1 // pred_check
      _
    $region59: #{sparse_autoencoder_forward.1} parent=1 // pred_check_branch
      %139 = sbr.rel (0) target = $region61
    $region60: #{sparse_autoencoder_forward.1} parent=1 // pred_region
      %140 = dma.done [#allocation12], 2048
    $region61: #{sparse_autoencoder_forward.1} parent=1 // pred_fallthru
      _
    // Predicated region
    $region62: #{sparse_autoencoder_forward.1} parent=1 // pred_check
      _
    $region63: #{sparse_autoencoder_forward.1} parent=1 // pred_check_branch
      %142 = sbr.rel (0) target = $region65
    $region64: #{sparse_autoencoder_forward.1} parent=1 // pred_region
      %143 = dma.done [#allocation12], 32
    $region65: #{sparse_autoencoder_forward.1} parent=1 // pred_fallthru
      _
    // Predicated region
    $region66: #{sparse_autoencoder_forward.1} parent=1 // pred_check
      _
    $region67: #{sparse_autoencoder_forward.1} parent=1 // pred_check_branch
      %145 = sbr.rel (0) target = $region69
    $region68: #{sparse_autoencoder_forward.1} parent=1 // pred_region
      %146 = dma.done [#allocation15], 16384
    $region69: #{sparse_autoencoder_forward.1} parent=1 // pred_fallthru
      _
    // Predicated region
    $region70: #{sparse_autoencoder_forward.1} parent=1 // pred_check
      _
    $region71: #{sparse_autoencoder_forward.1} parent=1 // pred_check_branch
      %148 = sbr.rel (0) target = $region73
    $region72: #{sparse_autoencoder_forward.1} parent=1 // pred_region
      %149 = dma.done [#allocation15], 128
    $region73: #{sparse_autoencoder_forward.1} parent=1 // pred_fallthru
      _
    %v151 = vld [vmem:[#allocation2] sm:$0xff]
    %v152 = vld [vmem:[#allocation2 + $0x8] sm:$0xff]
    %v153 = vld [vmem:[#allocation2 + $0x10] sm:$0xff]
    %v154 = vld [vmem:[#allocation2 + $0x18] sm:$0xff]
    %v155 = vld [vmem:[#allocation2 + $0x20] sm:$0xff]
    %v156 = vld [vmem:[#allocation2 + $0x28] sm:$0xff]
    %v157 = vld [vmem:[#allocation2 + $0x30] sm:$0xff]
    %v158 = vld [vmem:[#allocation2 + $0x38] sm:$0xff]
    %v159 = vld [vmem:[#allocation2 + $0x40] sm:$0xff]
    %v160 = vld [vmem:[#allocation2 + $0x48] sm:$0xff]
    %v161 = vld [vmem:[#allocation2 + $0x50] sm:$0xff]
    %v162 = vld [vmem:[#allocation2 + $0x58] sm:$0xff]
    %v163 = vld [vmem:[#allocation2 + $0x60] sm:$0xff]
    %v164 = vld [vmem:[#allocation2 + $0x68] sm:$0xff]
    %v165 = vld [vmem:[#allocation2 + $0x70] sm:$0xff]
    %v166 = vld [vmem:[#allocation2 + $0x78] sm:$0xff]
    %v167 = vpack.c.bf16 %v159, %v151
    %v168 = vpack.c.bf16 %v160, %v152
    %v169 = vpack.c.bf16 %v161, %v153
    %v170 = vpack.c.bf16 %v162, %v154
    %v171 = vpack.c.bf16 %v163, %v155
    %v172 = vpack.c.bf16 %v164, %v156
    %v173 = vpack.c.bf16 %v165, %v157
    %v174 = vpack.c.bf16 %v166, %v158
    %v175 = vld [vmem:[#allocation5] sm:$0xff]
    %v176 = vld [vmem:[#allocation5 + $0x8] sm:$0xff]
    %v177 = vld [vmem:[#allocation5 + $0x10] sm:$0xff]
    %v178 = vld [vmem:[#allocation5 + $0x18] sm:$0xff]
    %v179 = vld [vmem:[#allocation5 + $0x20] sm:$0xff]
    %v180 = vld [vmem:[#allocation5 + $0x28] sm:$0xff]
    %v181 = vld [vmem:[#allocation5 + $0x30] sm:$0xff]
    %v182 = vld [vmem:[#allocation5 + $0x38] sm:$0xff]
    %v183 = vld [vmem:[#allocation5 + $0x40] sm:$0xff]
    %v184 = vld [vmem:[#allocation5 + $0x48] sm:$0xff]
    %v185 = vld [vmem:[#allocation5 + $0x50] sm:$0xff]
    %v186 = vld [vmem:[#allocation5 + $0x58] sm:$0xff]
    %v187 = vld [vmem:[#allocation5 + $0x60] sm:$0xff]
    %v188 = vld [vmem:[#allocation5 + $0x68] sm:$0xff]
    %v189 = vld [vmem:[#allocation5 + $0x70] sm:$0xff]
    %v190 = vld [vmem:[#allocation5 + $0x78] sm:$0xff]
    %v191 = vld [vmem:[#allocation5 + $0x80] sm:$0xff]
    %v192 = vld [vmem:[#allocation5 + $0x88] sm:$0xff]
    %v193 = vld [vmem:[#allocation5 + $0x90] sm:$0xff]
    %v194 = vld [vmem:[#allocation5 + $0x98] sm:$0xff]
    %v195 = vld [vmem:[#allocation5 + $0xa0] sm:$0xff]
    %v196 = vld [vmem:[#allocation5 + $0xa8] sm:$0xff]
    %v197 = vld [vmem:[#allocation5 + $0xb0] sm:$0xff]
    %v198 = vld [vmem:[#allocation5 + $0xb8] sm:$0xff]
    %v199 = vld [vmem:[#allocation5 + $0xc0] sm:$0xff]
    %v200 = vld [vmem:[#allocation5 + $0xc8] sm:$0xff]
    %v201 = vld [vmem:[#allocation5 + $0xd0] sm:$0xff]
    %v202 = vld [vmem:[#allocation5 + $0xd8] sm:$0xff]
    %v203 = vld [vmem:[#allocation5 + $0xe0] sm:$0xff]
    %v204 = vld [vmem:[#allocation5 + $0xe8] sm:$0xff]
    %v205 = vld [vmem:[#allocation5 + $0xf0] sm:$0xff]
    %v206 = vld [vmem:[#allocation5 + $0xf8] sm:$0xff]
    %v207 = vld [vmem:[#allocation5 + $0x100] sm:$0xff]
    %v208 = vld [vmem:[#allocation5 + $0x108] sm:$0xff]
    %v209 = vld [vmem:[#allocation5 + $0x110] sm:$0xff]
    %v210 = vld [vmem:[#allocation5 + $0x118] sm:$0xff]
    %v211 = vld [vmem:[#allocation5 + $0x120] sm:$0xff]
    %v212 = vld [vmem:[#allocation5 + $0x128] sm:$0xff]
    %v213 = vld [vmem:[#allocation5 + $0x130] sm:$0xff]
    %v214 = vld [vmem:[#allocation5 + $0x138] sm:$0xff]
    %v215 = vld [vmem:[#allocation5 + $0x140] sm:$0xff]
    %v216 = vld [vmem:[#allocation5 + $0x148] sm:$0xff]
    %v217 = vld [vmem:[#allocation5 + $0x150] sm:$0xff]
    %v218 = vld [vmem:[#allocation5 + $0x158] sm:$0xff]
    %v219 = vld [vmem:[#allocation5 + $0x160] sm:$0xff]
    %v220 = vld [vmem:[#allocation5 + $0x168] sm:$0xff]
    %v221 = vld [vmem:[#allocation5 + $0x170] sm:$0xff]
    %v222 = vld [vmem:[#allocation5 + $0x178] sm:$0xff]
    %v223 = vld [vmem:[#allocation5 + $0x180] sm:$0xff]
    %v224 = vld [vmem:[#allocation5 + $0x188] sm:$0xff]
    %v225 = vld [vmem:[#allocation5 + $0x190] sm:$0xff]
    %v226 = vld [vmem:[#allocation5 + $0x198] sm:$0xff]
    %v227 = vld [vmem:[#allocation5 + $0x1a0] sm:$0xff]
    %v228 = vld [vmem:[#allocation5 + $0x1a8] sm:$0xff]
    %v229 = vld [vmem:[#allocation5 + $0x1b0] sm:$0xff]
    %v230 = vld [vmem:[#allocation5 + $0x1b8] sm:$0xff]
    %v231 = vld [vmem:[#allocation5 + $0x1c0] sm:$0xff]
    %v232 = vld [vmem:[#allocation5 + $0x1c8] sm:$0xff]
    %v233 = vld [vmem:[#allocation5 + $0x1d0] sm:$0xff]
    %v234 = vld [vmem:[#allocation5 + $0x1d8] sm:$0xff]
    %v235 = vld [vmem:[#allocation5 + $0x1e0] sm:$0xff]
    %v236 = vld [vmem:[#allocation5 + $0x1e8] sm:$0xff]
    %v237 = vld [vmem:[#allocation5 + $0x1f0] sm:$0xff]
    %v238 = vld [vmem:[#allocation5 + $0x1f8] sm:$0xff]
    %v239 = vld [vmem:[#allocation5 + $0x200] sm:$0xff]
    %v240 = vld [vmem:[#allocation5 + $0x208] sm:$0xff]
    %v241 = vld [vmem:[#allocation5 + $0x210] sm:$0xff]
    %v242 = vld [vmem:[#allocation5 + $0x218] sm:$0xff]
    %v243 = vld [vmem:[#allocation5 + $0x220] sm:$0xff]
    %v244 = vld [vmem:[#allocation5 + $0x228] sm:$0xff]
    %v245 = vld [vmem:[#allocation5 + $0x230] sm:$0xff]
    %v246 = vld [vmem:[#allocation5 + $0x238] sm:$0xff]
    %v247 = vld [vmem:[#allocation5 + $0x240] sm:$0xff]
    %v248 = vld [vmem:[#allocation5 + $0x248] sm:$0xff]
    %v249 = vld [vmem:[#allocation5 + $0x250] sm:$0xff]
    %v250 = vld [vmem:[#allocation5 + $0x258] sm:$0xff]
    %v251 = vld [vmem:[#allocation5 + $0x260] sm:$0xff]
    %v252 = vld [vmem:[#allocation5 + $0x268] sm:$0xff]
    %v253 = vld [vmem:[#allocation5 + $0x270] sm:$0xff]
    %v254 = vld [vmem:[#allocation5 + $0x278] sm:$0xff]
    %v255 = vld [vmem:[#allocation5 + $0x280] sm:$0xff]
    %v256 = vld [vmem:[#allocation5 + $0x288] sm:$0xff]
    %v257 = vld [vmem:[#allocation5 + $0x290] sm:$0xff]
    %v258 = vld [vmem:[#allocation5 + $0x298] sm:$0xff]
    %v259 = vld [vmem:[#allocation5 + $0x2a0] sm:$0xff]
    %v260 = vld [vmem:[#allocation5 + $0x2a8] sm:$0xff]
    %v261 = vld [vmem:[#allocation5 + $0x2b0] sm:$0xff]
    %v262 = vld [vmem:[#allocation5 + $0x2b8] sm:$0xff]
    %v263 = vld [vmem:[#allocation5 + $0x2c0] sm:$0xff]
    %v264 = vld [vmem:[#allocation5 + $0x2c8] sm:$0xff]
    %v265 = vld [vmem:[#allocation5 + $0x2d0] sm:$0xff]
    %v266 = vld [vmem:[#allocation5 + $0x2d8] sm:$0xff]
    %v267 = vld [vmem:[#allocation5 + $0x2e0] sm:$0xff]
    %v268 = vld [vmem:[#allocation5 + $0x2e8] sm:$0xff]
    %v269 = vld [vmem:[#allocation5 + $0x2f0] sm:$0xff]
    %v270 = vld [vmem:[#allocation5 + $0x2f8] sm:$0xff]
    %v271 = vld [vmem:[#allocation5 + $0x300] sm:$0xff]
    %v272 = vld [vmem:[#allocation5 + $0x308] sm:$0xff]
    %v273 = vld [vmem:[#allocation5 + $0x310] sm:$0xff]
    %v274 = vld [vmem:[#allocation5 + $0x318] sm:$0xff]
    %v275 = vld [vmem:[#allocation5 + $0x320] sm:$0xff]
    %v276 = vld [vmem:[#allocation5 + $0x328] sm:$0xff]
    %v277 = vld [vmem:[#allocation5 + $0x330] sm:$0xff]
    %v278 = vld [vmem:[#allocation5 + $0x338] sm:$0xff]
    %v279 = vld [vmem:[#allocation5 + $0x340] sm:$0xff]
    %v280 = vld [vmem:[#allocation5 + $0x348] sm:$0xff]
    %v281 = vld [vmem:[#allocation5 + $0x350] sm:$0xff]
    %v282 = vld [vmem:[#allocation5 + $0x358] sm:$0xff]
    %v283 = vld [vmem:[#allocation5 + $0x360] sm:$0xff]
    %v284 = vld [vmem:[#allocation5 + $0x368] sm:$0xff]
    %v285 = vld [vmem:[#allocation5 + $0x370] sm:$0xff]
    %v286 = vld [vmem:[#allocation5 + $0x378] sm:$0xff]
    %v287 = vld [vmem:[#allocation5 + $0x380] sm:$0xff]
    %v288 = vld [vmem:[#allocation5 + $0x388] sm:$0xff]
    %v289 = vld [vmem:[#allocation5 + $0x390] sm:$0xff]
    %v290 = vld [vmem:[#allocation5 + $0x398] sm:$0xff]
    %v291 = vld [vmem:[#allocation5 + $0x3a0] sm:$0xff]
    %v292 = vld [vmem:[#allocation5 + $0x3a8] sm:$0xff]
    %v293 = vld [vmem:[#allocation5 + $0x3b0] sm:$0xff]
    %v294 = vld [vmem:[#allocation5 + $0x3b8] sm:$0xff]
    %v295 = vld [vmem:[#allocation5 + $0x3c0] sm:$0xff]
    %v296 = vld [vmem:[#allocation5 + $0x3c8] sm:$0xff]
    %v297 = vld [vmem:[#allocation5 + $0x3d0] sm:$0xff]
    %v298 = vld [vmem:[#allocation5 + $0x3d8] sm:$0xff]
    %v299 = vld [vmem:[#allocation5 + $0x3e0] sm:$0xff]
    %v300 = vld [vmem:[#allocation5 + $0x3e8] sm:$0xff]
    %v301 = vld [vmem:[#allocation5 + $0x3f0] sm:$0xff]
    %v302 = vld [vmem:[#allocation5 + $0x3f8] sm:$0xff]
    %v303 = vld [vmem:[#allocation7] sm:$0x3]
    %v305 = vlaneseq
    %v306 = vshrl.u32 %v305, 7
    %v307 = vsub.s32 0, %v306
    %v308 = vrot.slane %v303, %v307
    %v309 = vlaneseq
    %v310 = vshrl.u32 %v309, 7
    %v311 = vsub.s32 1, %v310
    %v312 = vrot.slane %v303, %v311
    %v443 = vunpack.c.l.b16 %v175
    %v444 = vunpack.c.h.b16 %v175
    %v445 = vunpack.c.l.b16 %v176
    %v446 = vunpack.c.h.b16 %v176
    %v447 = vunpack.c.l.b16 %v177
    %v448 = vunpack.c.h.b16 %v177
    %v449 = vunpack.c.l.b16 %v178
    %v450 = vunpack.c.h.b16 %v178
    %v451 = vunpack.c.l.b16 %v179
    %v452 = vunpack.c.h.b16 %v179
    %v453 = vunpack.c.l.b16 %v180
    %v454 = vunpack.c.h.b16 %v180
    %v455 = vunpack.c.l.b16 %v181
    %v456 = vunpack.c.h.b16 %v181
    %v457 = vunpack.c.l.b16 %v182
    %v458 = vunpack.c.h.b16 %v182
    %v459 = vunpack.c.l.b16 %v183
    %v460 = vunpack.c.h.b16 %v183
    %v461 = vunpack.c.l.b16 %v184
    %v462 = vunpack.c.h.b16 %v184
    %v463 = vunpack.c.l.b16 %v185
    %v464 = vunpack.c.h.b16 %v185
    %v465 = vunpack.c.l.b16 %v186
    %v466 = vunpack.c.h.b16 %v186
    %v467 = vunpack.c.l.b16 %v187
    %v468 = vunpack.c.h.b16 %v187
    %v469 = vunpack.c.l.b16 %v188
    %v470 = vunpack.c.h.b16 %v188
    %v471 = vunpack.c.l.b16 %v189
    %v472 = vunpack.c.h.b16 %v189
    %v473 = vunpack.c.l.b16 %v190
    %v474 = vunpack.c.h.b16 %v190
    %v475 = vunpack.c.l.b16 %v191
    %v476 = vunpack.c.h.b16 %v191
    %v477 = vunpack.c.l.b16 %v192
    %v478 = vunpack.c.h.b16 %v192
    %v479 = vunpack.c.l.b16 %v193
    %v480 = vunpack.c.h.b16 %v193
    %v481 = vunpack.c.l.b16 %v194
    %v482 = vunpack.c.h.b16 %v194
    %v483 = vunpack.c.l.b16 %v195
    %v484 = vunpack.c.h.b16 %v195
    %v485 = vunpack.c.l.b16 %v196
    %v486 = vunpack.c.h.b16 %v196
    %v487 = vunpack.c.l.b16 %v197
    %v488 = vunpack.c.h.b16 %v197
    %v489 = vunpack.c.l.b16 %v198
    %v490 = vunpack.c.h.b16 %v198
    %v491 = vunpack.c.l.b16 %v199
    %v492 = vunpack.c.h.b16 %v199
    %v493 = vunpack.c.l.b16 %v200
    %v494 = vunpack.c.h.b16 %v200
    %v495 = vunpack.c.l.b16 %v201
    %v496 = vunpack.c.h.b16 %v201
    %v497 = vunpack.c.l.b16 %v202
    %v498 = vunpack.c.h.b16 %v202
    %v499 = vunpack.c.l.b16 %v203
    %v500 = vunpack.c.h.b16 %v203
    %v501 = vunpack.c.l.b16 %v204
    %v502 = vunpack.c.h.b16 %v204
    %v503 = vunpack.c.l.b16 %v205
    %v504 = vunpack.c.h.b16 %v205
    %v505 = vunpack.c.l.b16 %v206
    %v506 = vunpack.c.h.b16 %v206
    %v507 = vunpack.c.l.b16 %v207
    %v508 = vunpack.c.h.b16 %v207
    %v509 = vunpack.c.l.b16 %v208
    %v510 = vunpack.c.h.b16 %v208
    %v511 = vunpack.c.l.b16 %v209
    %v512 = vunpack.c.h.b16 %v209
    %v513 = vunpack.c.l.b16 %v210
    %v514 = vunpack.c.h.b16 %v210
    %v515 = vunpack.c.l.b16 %v211
    %v516 = vunpack.c.h.b16 %v211
    %v517 = vunpack.c.l.b16 %v212
    %v518 = vunpack.c.h.b16 %v212
    %v519 = vunpack.c.l.b16 %v213
    %v520 = vunpack.c.h.b16 %v213
    %v521 = vunpack.c.l.b16 %v214
    %v522 = vunpack.c.h.b16 %v214
    %v523 = vunpack.c.l.b16 %v215
    %v524 = vunpack.c.h.b16 %v215
    %v525 = vunpack.c.l.b16 %v216
    %v526 = vunpack.c.h.b16 %v216
    %v527 = vunpack.c.l.b16 %v217
    %v528 = vunpack.c.h.b16 %v217
    %v529 = vunpack.c.l.b16 %v218
    %v530 = vunpack.c.h.b16 %v218
    %v531 = vunpack.c.l.b16 %v219
    %v532 = vunpack.c.h.b16 %v219
    %v533 = vunpack.c.l.b16 %v220
    %v534 = vunpack.c.h.b16 %v220
    %v535 = vunpack.c.l.b16 %v221
    %v536 = vunpack.c.h.b16 %v221
    %v537 = vunpack.c.l.b16 %v222
    %v538 = vunpack.c.h.b16 %v222
    %v539 = vunpack.c.l.b16 %v223
    %v540 = vunpack.c.h.b16 %v223
    %v541 = vunpack.c.l.b16 %v224
    %v542 = vunpack.c.h.b16 %v224
    %v543 = vunpack.c.l.b16 %v225
    %v544 = vunpack.c.h.b16 %v225
    %v545 = vunpack.c.l.b16 %v226
    %v546 = vunpack.c.h.b16 %v226
    %v547 = vunpack.c.l.b16 %v227
    %v548 = vunpack.c.h.b16 %v227
    %v549 = vunpack.c.l.b16 %v228
    %v550 = vunpack.c.h.b16 %v228
    %v551 = vunpack.c.l.b16 %v229
    %v552 = vunpack.c.h.b16 %v229
    %v553 = vunpack.c.l.b16 %v230
    %v554 = vunpack.c.h.b16 %v230
    %v555 = vunpack.c.l.b16 %v231
    %v556 = vunpack.c.h.b16 %v231
    %v557 = vunpack.c.l.b16 %v232
    %v558 = vunpack.c.h.b16 %v232
    %v559 = vunpack.c.l.b16 %v233
    %v560 = vunpack.c.h.b16 %v233
    %v561 = vunpack.c.l.b16 %v234
    %v562 = vunpack.c.h.b16 %v234
    %v563 = vunpack.c.l.b16 %v235
    %v564 = vunpack.c.h.b16 %v235
    %v565 = vunpack.c.l.b16 %v236
    %v566 = vunpack.c.h.b16 %v236
    %v567 = vunpack.c.l.b16 %v237
    %v568 = vunpack.c.h.b16 %v237
    %v569 = vunpack.c.l.b16 %v238
    %v570 = vunpack.c.h.b16 %v238
    %v571 = vunpack.c.l.b16 %v239
    %v572 = vunpack.c.h.b16 %v239
    %v573 = vunpack.c.l.b16 %v240
    %v574 = vunpack.c.h.b16 %v240
    %v575 = vunpack.c.l.b16 %v241
    %v576 = vunpack.c.h.b16 %v241
    %v577 = vunpack.c.l.b16 %v242
    %v578 = vunpack.c.h.b16 %v242
    %v579 = vunpack.c.l.b16 %v243
    %v580 = vunpack.c.h.b16 %v243
    %v581 = vunpack.c.l.b16 %v244
    %v582 = vunpack.c.h.b16 %v244
    %v583 = vunpack.c.l.b16 %v245
    %v584 = vunpack.c.h.b16 %v245
    %v585 = vunpack.c.l.b16 %v246
    %v586 = vunpack.c.h.b16 %v246
    %v587 = vunpack.c.l.b16 %v247
    %v588 = vunpack.c.h.b16 %v247
    %v589 = vunpack.c.l.b16 %v248
    %v590 = vunpack.c.h.b16 %v248
    %v591 = vunpack.c.l.b16 %v249
    %v592 = vunpack.c.h.b16 %v249
    %v593 = vunpack.c.l.b16 %v250
    %v594 = vunpack.c.h.b16 %v250
    %v595 = vunpack.c.l.b16 %v251
    %v596 = vunpack.c.h.b16 %v251
    %v597 = vunpack.c.l.b16 %v252
    %v598 = vunpack.c.h.b16 %v252
    %v599 = vunpack.c.l.b16 %v253
    %v600 = vunpack.c.h.b16 %v253
    %v601 = vunpack.c.l.b16 %v254
    %v602 = vunpack.c.h.b16 %v254
    %v603 = vunpack.c.l.b16 %v255
    %v604 = vunpack.c.h.b16 %v255
    %v605 = vunpack.c.l.b16 %v256
    %v606 = vunpack.c.h.b16 %v256
    %v607 = vunpack.c.l.b16 %v257
    %v608 = vunpack.c.h.b16 %v257
    %v609 = vunpack.c.l.b16 %v258
    %v610 = vunpack.c.h.b16 %v258
    %v611 = vunpack.c.l.b16 %v259
    %v612 = vunpack.c.h.b16 %v259
    %v613 = vunpack.c.l.b16 %v260
    %v614 = vunpack.c.h.b16 %v260
    %v615 = vunpack.c.l.b16 %v261
    %v616 = vunpack.c.h.b16 %v261
    %v617 = vunpack.c.l.b16 %v262
    %v618 = vunpack.c.h.b16 %v262
    %v619 = vunpack.c.l.b16 %v263
    %v620 = vunpack.c.h.b16 %v263
    %v621 = vunpack.c.l.b16 %v264
    %v622 = vunpack.c.h.b16 %v264
    %v623 = vunpack.c.l.b16 %v265
    %v624 = vunpack.c.h.b16 %v265
    %v625 = vunpack.c.l.b16 %v266
    %v626 = vunpack.c.h.b16 %v266
    %v627 = vunpack.c.l.b16 %v267
    %v628 = vunpack.c.h.b16 %v267
    %v629 = vunpack.c.l.b16 %v268
    %v630 = vunpack.c.h.b16 %v268
    %v631 = vunpack.c.l.b16 %v269
    %v632 = vunpack.c.h.b16 %v269
    %v633 = vunpack.c.l.b16 %v270
    %v634 = vunpack.c.h.b16 %v270
    %v635 = vunpack.c.l.b16 %v271
    %v636 = vunpack.c.h.b16 %v271
    %v637 = vunpack.c.l.b16 %v272
    %v638 = vunpack.c.h.b16 %v272
    %v639 = vunpack.c.l.b16 %v273
    %v640 = vunpack.c.h.b16 %v273
    %v641 = vunpack.c.l.b16 %v274
    %v642 = vunpack.c.h.b16 %v274
    %v643 = vunpack.c.l.b16 %v275
    %v644 = vunpack.c.h.b16 %v275
    %v645 = vunpack.c.l.b16 %v276
    %v646 = vunpack.c.h.b16 %v276
    %v647 = vunpack.c.l.b16 %v277
    %v648 = vunpack.c.h.b16 %v277
    %v649 = vunpack.c.l.b16 %v278
    %v650 = vunpack.c.h.b16 %v278
    %v651 = vunpack.c.l.b16 %v279
    %v652 = vunpack.c.h.b16 %v279
    %v653 = vunpack.c.l.b16 %v280
    %v654 = vunpack.c.h.b16 %v280
    %v655 = vunpack.c.l.b16 %v281
    %v656 = vunpack.c.h.b16 %v281
    %v657 = vunpack.c.l.b16 %v282
    %v658 = vunpack.c.h.b16 %v282
    %v659 = vunpack.c.l.b16 %v283
    %v660 = vunpack.c.h.b16 %v283
    %v661 = vunpack.c.l.b16 %v284
    %v662 = vunpack.c.h.b16 %v284
    %v663 = vunpack.c.l.b16 %v285
    %v664 = vunpack.c.h.b16 %v285
    %v665 = vunpack.c.l.b16 %v286
    %v666 = vunpack.c.h.b16 %v286
    %v667 = vunpack.c.l.b16 %v287
    %v668 = vunpack.c.h.b16 %v287
    %v669 = vunpack.c.l.b16 %v288
    %v670 = vunpack.c.h.b16 %v288
    %v671 = vunpack.c.l.b16 %v289
    %v672 = vunpack.c.h.b16 %v289
    %v673 = vunpack.c.l.b16 %v290
    %v674 = vunpack.c.h.b16 %v290
    %v675 = vunpack.c.l.b16 %v291
    %v676 = vunpack.c.h.b16 %v291
    %v677 = vunpack.c.l.b16 %v292
    %v678 = vunpack.c.h.b16 %v292
    %v679 = vunpack.c.l.b16 %v293
    %v680 = vunpack.c.h.b16 %v293
    %v681 = vunpack.c.l.b16 %v294
    %v682 = vunpack.c.h.b16 %v294
    %v683 = vunpack.c.l.b16 %v295
    %v684 = vunpack.c.h.b16 %v295
    %v685 = vunpack.c.l.b16 %v296
    %v686 = vunpack.c.h.b16 %v296
    %v687 = vunpack.c.l.b16 %v297
    %v688 = vunpack.c.h.b16 %v297
    %v689 = vunpack.c.l.b16 %v298
    %v690 = vunpack.c.h.b16 %v298
    %v691 = vunpack.c.l.b16 %v299
    %v692 = vunpack.c.h.b16 %v299
    %v693 = vunpack.c.l.b16 %v300
    %v694 = vunpack.c.h.b16 %v300
    %v695 = vunpack.c.l.b16 %v301
    %v696 = vunpack.c.h.b16 %v301
    %v697 = vunpack.c.l.b16 %v302
    %v698 = vunpack.c.h.b16 %v302
    %v699 = vpack.c.b16 %v445, %v443
    %v700 = vpack.c.b16 %v446, %v444
    %v701 = vpack.c.b16 %v449, %v447
    %v702 = vpack.c.b16 %v450, %v448
    %v703 = vpack.c.b16 %v453, %v451
    %v704 = vpack.c.b16 %v454, %v452
    %v705 = vpack.c.b16 %v457, %v455
    %v706 = vpack.c.b16 %v458, %v456
    %v707 = vpack.c.b16 %v461, %v459
    %v708 = vpack.c.b16 %v462, %v460
    %v709 = vpack.c.b16 %v465, %v463
    %v710 = vpack.c.b16 %v466, %v464
    %v711 = vpack.c.b16 %v469, %v467
    %v712 = vpack.c.b16 %v470, %v468
    %v713 = vpack.c.b16 %v473, %v471
    %v714 = vpack.c.b16 %v474, %v472
    %v715 = vpack.c.b16 %v477, %v475
    %v716 = vpack.c.b16 %v478, %v476
    %v717 = vpack.c.b16 %v481, %v479
    %v718 = vpack.c.b16 %v482, %v480
    %v719 = vpack.c.b16 %v485, %v483
    %v720 = vpack.c.b16 %v486, %v484
    %v721 = vpack.c.b16 %v489, %v487
    %v722 = vpack.c.b16 %v490, %v488
    %v723 = vpack.c.b16 %v493, %v491
    %v724 = vpack.c.b16 %v494, %v492
    %v725 = vpack.c.b16 %v497, %v495
    %v726 = vpack.c.b16 %v498, %v496
    %v727 = vpack.c.b16 %v501, %v499
    %v728 = vpack.c.b16 %v502, %v500
    %v729 = vpack.c.b16 %v505, %v503
    %v730 = vpack.c.b16 %v506, %v504
    %v731 = vpack.c.b16 %v509, %v507
    %v732 = vpack.c.b16 %v510, %v508
    %v733 = vpack.c.b16 %v513, %v511
    %v734 = vpack.c.b16 %v514, %v512
    %v735 = vpack.c.b16 %v517, %v515
    %v736 = vpack.c.b16 %v518, %v516
    %v737 = vpack.c.b16 %v521, %v519
    %v738 = vpack.c.b16 %v522, %v520
    %v739 = vpack.c.b16 %v525, %v523
    %v740 = vpack.c.b16 %v526, %v524
    %v741 = vpack.c.b16 %v529, %v527
    %v742 = vpack.c.b16 %v530, %v528
    %v743 = vpack.c.b16 %v533, %v531
    %v744 = vpack.c.b16 %v534, %v532
    %v745 = vpack.c.b16 %v537, %v535
    %v746 = vpack.c.b16 %v538, %v536
    %v747 = vpack.c.b16 %v541, %v539
    %v748 = vpack.c.b16 %v542, %v540
    %v749 = vpack.c.b16 %v545, %v543
    %v750 = vpack.c.b16 %v546, %v544
    %v751 = vpack.c.b16 %v549, %v547
    %v752 = vpack.c.b16 %v550, %v548
    %v753 = vpack.c.b16 %v553, %v551
    %v754 = vpack.c.b16 %v554, %v552
    %v755 = vpack.c.b16 %v557, %v555
    %v756 = vpack.c.b16 %v558, %v556
    %v757 = vpack.c.b16 %v561, %v559
    %v758 = vpack.c.b16 %v562, %v560
    %v759 = vpack.c.b16 %v565, %v563
    %v760 = vpack.c.b16 %v566, %v564
    %v761 = vpack.c.b16 %v569, %v567
    %v762 = vpack.c.b16 %v570, %v568
    %v763 = vpack.c.b16 %v573, %v571
    %v764 = vpack.c.b16 %v574, %v572
    %v765 = vpack.c.b16 %v577, %v575
    %v766 = vpack.c.b16 %v578, %v576
    %v767 = vpack.c.b16 %v581, %v579
    %v768 = vpack.c.b16 %v582, %v580
    %v769 = vpack.c.b16 %v585, %v583
    %v770 = vpack.c.b16 %v586, %v584
    %v771 = vpack.c.b16 %v589, %v587
    %v772 = vpack.c.b16 %v590, %v588
    %v773 = vpack.c.b16 %v593, %v591
    %v774 = vpack.c.b16 %v594, %v592
    %v775 = vpack.c.b16 %v597, %v595
    %v776 = vpack.c.b16 %v598, %v596
    %v777 = vpack.c.b16 %v601, %v599
    %v778 = vpack.c.b16 %v602, %v600
    %v779 = vpack.c.b16 %v605, %v603
    %v780 = vpack.c.b16 %v606, %v604
    %v781 = vpack.c.b16 %v609, %v607
    %v782 = vpack.c.b16 %v610, %v608
    %v783 = vpack.c.b16 %v613, %v611
    %v784 = vpack.c.b16 %v614, %v612
    %v785 = vpack.c.b16 %v617, %v615
    %v786 = vpack.c.b16 %v618, %v616
    %v787 = vpack.c.b16 %v621, %v619
    %v788 = vpack.c.b16 %v622, %v620
    %v789 = vpack.c.b16 %v625, %v623
    %v790 = vpack.c.b16 %v626, %v624
    %v791 = vpack.c.b16 %v629, %v627
    %v792 = vpack.c.b16 %v630, %v628
    %v793 = vpack.c.b16 %v633, %v631
    %v794 = vpack.c.b16 %v634, %v632
    %v795 = vpack.c.b16 %v637, %v635
    %v796 = vpack.c.b16 %v638, %v636
    %v797 = vpack.c.b16 %v641, %v639
    %v798 = vpack.c.b16 %v642, %v640
    %v799 = vpack.c.b16 %v645, %v643
    %v800 = vpack.c.b16 %v646, %v644
    %v801 = vpack.c.b16 %v649, %v647
    %v802 = vpack.c.b16 %v650, %v648
    %v803 = vpack.c.b16 %v653, %v651
    %v804 = vpack.c.b16 %v654, %v652
    %v805 = vpack.c.b16 %v657, %v655
    %v806 = vpack.c.b16 %v658, %v656
    %v807 = vpack.c.b16 %v661, %v659
    %v808 = vpack.c.b16 %v662, %v660
    %v809 = vpack.c.b16 %v665, %v663
    %v810 = vpack.c.b16 %v666, %v664
    %v811 = vpack.c.b16 %v669, %v667
    %v812 = vpack.c.b16 %v670, %v668
    %v813 = vpack.c.b16 %v673, %v671
    %v814 = vpack.c.b16 %v674, %v672
    %v815 = vpack.c.b16 %v677, %v675
    %v816 = vpack.c.b16 %v678, %v676
    %v817 = vpack.c.b16 %v681, %v679
    %v818 = vpack.c.b16 %v682, %v680
    %v819 = vpack.c.b16 %v685, %v683
    %v820 = vpack.c.b16 %v686, %v684
    %v821 = vpack.c.b16 %v689, %v687
    %v822 = vpack.c.b16 %v690, %v688
    %v823 = vpack.c.b16 %v693, %v691
    %v824 = vpack.c.b16 %v694, %v692
    %v825 = vpack.c.b16 %v697, %v695
    %v826 = vpack.c.b16 %v698, %v696
    %955 = vmatprep.subr.bf16.mxu0 %v700
    %956 = vmatpush1.bf16.msra.mxu0 %v699
    %957 = vmatprep.subr.bf16.mxu0 %v702
    %958 = vmatpush1.bf16.msra.mxu0 %v701
    %959 = vmatprep.subr.bf16.mxu0 %v704
    %960 = vmatpush1.bf16.msra.mxu0 %v703
    %961 = vmatprep.subr.bf16.mxu0 %v706
    %962 = vmatpush1.bf16.msra.mxu0 %v705
    %963 = vmatprep.subr.bf16.mxu0 %v708
    %964 = vmatpush1.bf16.msra.mxu0 %v707
    %965 = vmatprep.subr.bf16.mxu0 %v710
    %966 = vmatpush1.bf16.msra.mxu0 %v709
    %967 = vmatprep.subr.bf16.mxu0 %v712
    %968 = vmatpush1.bf16.msra.mxu0 %v711
    %969 = vmatprep.subr.bf16.mxu0 %v714
    %970 = vmatpush1.bf16.msra.mxu0 %v713
    %971 = vmatprep.subr.bf16.mxu0 %v716
    %972 = vmatpush1.bf16.msra.mxu0 %v715
    %973 = vmatprep.subr.bf16.mxu0 %v718
    %974 = vmatpush1.bf16.msra.mxu0 %v717
    %975 = vmatprep.subr.bf16.mxu0 %v720
    %976 = vmatpush1.bf16.msra.mxu0 %v719
    %977 = vmatprep.subr.bf16.mxu0 %v722
    %978 = vmatpush1.bf16.msra.mxu0 %v721
    %979 = vmatprep.subr.bf16.mxu0 %v724
    %980 = vmatpush1.bf16.msra.mxu0 %v723
    %981 = vmatprep.subr.bf16.mxu0 %v726
    %982 = vmatpush1.bf16.msra.mxu0 %v725
    %983 = vmatprep.subr.bf16.mxu0 %v728
    %984 = vmatpush1.bf16.msra.mxu0 %v727
    %985 = vmatprep.subr.bf16.mxu0 %v730
    %986 = vmatpush1.bf16.msra.mxu0 %v729
    %987 = vmatprep.mubr.bf16.mxu0 %v168
    %988 = vmatmul.mubr.bf16.gmra.mrb[0].mxu0 %v167
    %v989 = vpop.f32.mrb[0].mxu0
    %v990 = vadd.f32 %v308, %v989
    %v991 = vpop.f32.mrb[0].mxu0
    %v992 = vadd.f32 %v312, %v991
    %v993 = vpop.f32.mrb[0].mxu0
    %v994 = vadd.f32 %v308, %v993
    %v995 = vpop.f32.mrb[0].mxu0
    %v996 = vadd.f32 %v312, %v995
    %997 = vdwg.mxu0
    %998 = vmatprep.subr.bf16.mxu0 %v732
    %999 = vmatpush1.bf16.msra.mxu0 %v731
    %1000 = vmatprep.subr.bf16.mxu0 %v734
    %1001 = vmatpush1.bf16.msra.mxu0 %v733
    %1002 = vmatprep.subr.bf16.mxu0 %v736
    %1003 = vmatpush1.bf16.msra.mxu0 %v735
    %1004 = vmatprep.subr.bf16.mxu0 %v738
    %1005 = vmatpush1.bf16.msra.mxu0 %v737
    %1006 = vmatprep.subr.bf16.mxu0 %v740
    %1007 = vmatpush1.bf16.msra.mxu0 %v739
    %1008 = vmatprep.subr.bf16.mxu0 %v742
    %1009 = vmatpush1.bf16.msra.mxu0 %v741
    %1010 = vmatprep.subr.bf16.mxu0 %v744
    %1011 = vmatpush1.bf16.msra.mxu0 %v743
    %1012 = vmatprep.subr.bf16.mxu0 %v746
    %1013 = vmatpush1.bf16.msra.mxu0 %v745
    %1014 = vmatprep.subr.bf16.mxu0 %v748
    %1015 = vmatpush1.bf16.msra.mxu0 %v747
    %1016 = vmatprep.subr.bf16.mxu0 %v750
    %1017 = vmatpush1.bf16.msra.mxu0 %v749
    %1018 = vmatprep.subr.bf16.mxu0 %v752
    %1019 = vmatpush1.bf16.msra.mxu0 %v751
    %1020 = vmatprep.subr.bf16.mxu0 %v754
    %1021 = vmatpush1.bf16.msra.mxu0 %v753
    %1022 = vmatprep.subr.bf16.mxu0 %v756
    %1023 = vmatpush1.bf16.msra.mxu0 %v755
    %1024 = vmatprep.subr.bf16.mxu0 %v758
    %1025 = vmatpush1.bf16.msra.mxu0 %v757
    %1026 = vmatprep.subr.bf16.mxu0 %v760
    %1027 = vmatpush1.bf16.msra.mxu0 %v759
    %1028 = vmatprep.subr.bf16.mxu0 %v762
    %1029 = vmatpush1.bf16.msra.mxu0 %v761
    %1030 = vmatprep.mubr.bf16.mxu0 %v170
    %1031 = vmatmul.mubr.bf16.gmra.mrb[0].mxu0 %v169
    %v1032 = vpop.f32.mrb[0].mxu0
    %v1033 = vadd.f32 %v990, %v1032
    %v1034 = vpop.f32.mrb[0].mxu0
    %v1035 = vadd.f32 %v992, %v1034
    %v1036 = vpop.f32.mrb[0].mxu0
    %v1037 = vadd.f32 %v994, %v1036
    %v1038 = vpop.f32.mrb[0].mxu0
    %v1039 = vadd.f32 %v996, %v1038
    %1040 = vdwg.mxu0
    %1041 = vmatprep.subr.bf16.mxu0 %v764
    %1042 = vmatpush1.bf16.msra.mxu0 %v763
    %1043 = vmatprep.subr.bf16.mxu0 %v766
    %1044 = vmatpush1.bf16.msra.mxu0 %v765
    %1045 = vmatprep.subr.bf16.mxu0 %v768
    %1046 = vmatpush1.bf16.msra.mxu0 %v767
    %1047 = vmatprep.subr.bf16.mxu0 %v770
    %1048 = vmatpush1.bf16.msra.mxu0 %v769
    %1049 = vmatprep.subr.bf16.mxu0 %v772
    %1050 = vmatpush1.bf16.msra.mxu0 %v771
    %1051 = vmatprep.subr.bf16.mxu0 %v774
    %1052 = vmatpush1.bf16.msra.mxu0 %v773
    %1053 = vmatprep.subr.bf16.mxu0 %v776
    %1054 = vmatpush1.bf16.msra.mxu0 %v775
    %1055 = vmatprep.subr.bf16.mxu0 %v778
    %1056 = vmatpush1.bf16.msra.mxu0 %v777
    %1057 = vmatprep.subr.bf16.mxu0 %v780
    %1058 = vmatpush1.bf16.msra.mxu0 %v779
    %1059 = vmatprep.subr.bf16.mxu0 %v782
    %1060 = vmatpush1.bf16.msra.mxu0 %v781
    %1061 = vmatprep.subr.bf16.mxu0 %v784
    %1062 = vmatpush1.bf16.msra.mxu0 %v783
    %1063 = vmatprep.subr.bf16.mxu0 %v786
    %1064 = vmatpush1.bf16.msra.mxu0 %v785
    %1065 = vmatprep.subr.bf16.mxu0 %v788
    %1066 = vmatpush1.bf16.msra.mxu0 %v787
    %1067 = vmatprep.subr.bf16.mxu0 %v790
    %1068 = vmatpush1.bf16.msra.mxu0 %v789
    %1069 = vmatprep.subr.bf16.mxu0 %v792
    %1070 = vmatpush1.bf16.msra.mxu0 %v791
    %1071 = vmatprep.subr.bf16.mxu0 %v794
    %1072 = vmatpush1.bf16.msra.mxu0 %v793
    %1073 = vmatprep.mubr.bf16.mxu0 %v172
    %1074 = vmatmul.mubr.bf16.gmra.mrb[0].mxu0 %v171
    %v1075 = vpop.f32.mrb[0].mxu0
    %v1076 = vadd.f32 %v1033, %v1075
    %v1077 = vpop.f32.mrb[0].mxu0
    %v1078 = vadd.f32 %v1035, %v1077
    %v1079 = vpop.f32.mrb[0].mxu0
    %v1080 = vadd.f32 %v1037, %v1079
    %v1081 = vpop.f32.mrb[0].mxu0
    %v1082 = vadd.f32 %v1039, %v1081
    %1083 = vdwg.mxu0
    %1084 = vmatprep.subr.bf16.mxu0 %v796
    %1085 = vmatpush1.bf16.msra.mxu0 %v795
    %1086 = vmatprep.subr.bf16.mxu0 %v798
    %1087 = vmatpush1.bf16.msra.mxu0 %v797
    %1088 = vmatprep.subr.bf16.mxu0 %v800
    %1089 = vmatpush1.bf16.msra.mxu0 %v799
    %1090 = vmatprep.subr.bf16.mxu0 %v802
    %1091 = vmatpush1.bf16.msra.mxu0 %v801
    %1092 = vmatprep.subr.bf16.mxu0 %v804
    %1093 = vmatpush1.bf16.msra.mxu0 %v803
    %1094 = vmatprep.subr.bf16.mxu0 %v806
    %1095 = vmatpush1.bf16.msra.mxu0 %v805
    %1096 = vmatprep.subr.bf16.mxu0 %v808
    %1097 = vmatpush1.bf16.msra.mxu0 %v807
    %1098 = vmatprep.subr.bf16.mxu0 %v810
    %1099 = vmatpush1.bf16.msra.mxu0 %v809
    %1100 = vmatprep.subr.bf16.mxu0 %v812
    %1101 = vmatpush1.bf16.msra.mxu0 %v811
    %1102 = vmatprep.subr.bf16.mxu0 %v814
    %1103 = vmatpush1.bf16.msra.mxu0 %v813
    %1104 = vmatprep.subr.bf16.mxu0 %v816
    %1105 = vmatpush1.bf16.msra.mxu0 %v815
    %1106 = vmatprep.subr.bf16.mxu0 %v818
    %1107 = vmatpush1.bf16.msra.mxu0 %v817
    %1108 = vmatprep.subr.bf16.mxu0 %v820
    %1109 = vmatpush1.bf16.msra.mxu0 %v819
    %1110 = vmatprep.subr.bf16.mxu0 %v822
    %1111 = vmatpush1.bf16.msra.mxu0 %v821
    %1112 = vmatprep.subr.bf16.mxu0 %v824
    %1113 = vmatpush1.bf16.msra.mxu0 %v823
    %1114 = vmatprep.subr.bf16.mxu0 %v826
    %1115 = vmatpush1.bf16.msra.mxu0 %v825
    %1116 = vmatprep.mubr.bf16.mxu0 %v174
    %1117 = vmatmul.mubr.bf16.gmra.mrb[0].mxu0 %v173
    %v1118 = vpop.f32.mrb[0].mxu0
    %v1119 = vadd.f32 %v1076, %v1118
    %v1120 = vpop.f32.mrb[0].mxu0
    %v1121 = vadd.f32 %v1078, %v1120
    %v1122 = vpop.f32.mrb[0].mxu0
    %v1123 = vadd.f32 %v1080, %v1122
    %v1124 = vpop.f32.mrb[0].mxu0
    %v1125 = vadd.f32 %v1082, %v1124
    %1126 = vdwg.mxu0
    %v1127 = vmax.f32 %v1119, 0.0
    %v1128 = vmax.f32 %v1121, 0.0
    %v1129 = vmax.f32 %v1123, 0.0
    %v1130 = vmax.f32 %v1125, 0.0
    %v1131 = vpack.c.bf16 %v1129, %v1127
    %v1132 = vpack.c.bf16 %v1130, %v1128
    %v1133 = vld [vmem:[#allocation8] sm:$0xf]
    %v1134 = vld [vmem:[#allocation8 + $0x4] sm:$0xf]
    %v1135 = vld [vmem:[#allocation8 + $0x8] sm:$0xf]
    %v1136 = vld [vmem:[#allocation8 + $0xc] sm:$0xf]
    %v1137 = vld [vmem:[#allocation8 + $0x10] sm:$0xf]
    %v1138 = vld [vmem:[#allocation8 + $0x14] sm:$0xf]
    %v1139 = vld [vmem:[#allocation8 + $0x18] sm:$0xf]
    %v1140 = vld [vmem:[#allocation8 + $0x1c] sm:$0xf]
    %v1141 = vld [vmem:[#allocation8 + $0x20] sm:$0xf]
    %v1142 = vld [vmem:[#allocation8 + $0x24] sm:$0xf]
    %v1143 = vld [vmem:[#allocation8 + $0x28] sm:$0xf]
    %v1144 = vld [vmem:[#allocation8 + $0x2c] sm:$0xf]
    %v1145 = vld [vmem:[#allocation8 + $0x30] sm:$0xf]
    %v1146 = vld [vmem:[#allocation8 + $0x34] sm:$0xf]
    %v1147 = vld [vmem:[#allocation8 + $0x38] sm:$0xf]
    %v1148 = vld [vmem:[#allocation8 + $0x3c] sm:$0xf]
    %v1149 = vld [vmem:[#allocation8 + $0x40] sm:$0xf]
    %v1150 = vld [vmem:[#allocation8 + $0x44] sm:$0xf]
    %v1151 = vld [vmem:[#allocation8 + $0x48] sm:$0xf]
    %v1152 = vld [vmem:[#allocation8 + $0x4c] sm:$0xf]
    %v1153 = vld [vmem:[#allocation8 + $0x50] sm:$0xf]
    %v1154 = vld [vmem:[#allocation8 + $0x54] sm:$0xf]
    %v1155 = vld [vmem:[#allocation8 + $0x58] sm:$0xf]
    %v1156 = vld [vmem:[#allocation8 + $0x5c] sm:$0xf]
    %v1157 = vld [vmem:[#allocation8 + $0x60] sm:$0xf]
    %v1158 = vld [vmem:[#allocation8 + $0x64] sm:$0xf]
    %v1159 = vld [vmem:[#allocation8 + $0x68] sm:$0xf]
    %v1160 = vld [vmem:[#allocation8 + $0x6c] sm:$0xf]
    %v1161 = vld [vmem:[#allocation8 + $0x70] sm:$0xf]
    %v1162 = vld [vmem:[#allocation8 + $0x74] sm:$0xf]
    %v1163 = vld [vmem:[#allocation8 + $0x78] sm:$0xf]
    %v1164 = vld [vmem:[#allocation8 + $0x7c] sm:$0xf]
    %v1165 = vld [vmem:[#allocation10] sm:$0x1]
    %v1167 = vlaneseq
    %v1168 = vshrl.u32 %v1167, 7
    %v1169 = vsub.s32 0, %v1168
    %v1170 = vrot.slane %v1165, %v1169
    %v1204 = vunpack.c.l.b16 %v1133
    %v1205 = vunpack.c.l.b16 %v1134
    %v1206 = vunpack.c.l.b16 %v1135
    %v1207 = vunpack.c.l.b16 %v1136
    %v1208 = vunpack.c.l.b16 %v1137
    %v1209 = vunpack.c.l.b16 %v1138
    %v1210 = vunpack.c.l.b16 %v1139
    %v1211 = vunpack.c.l.b16 %v1140
    %v1212 = vunpack.c.l.b16 %v1141
    %v1213 = vunpack.c.l.b16 %v1142
    %v1214 = vunpack.c.l.b16 %v1143
    %v1215 = vunpack.c.l.b16 %v1144
    %v1216 = vunpack.c.l.b16 %v1145
    %v1217 = vunpack.c.l.b16 %v1146
    %v1218 = vunpack.c.l.b16 %v1147
    %v1219 = vunpack.c.l.b16 %v1148
    %v1220 = vunpack.c.l.b16 %v1149
    %v1221 = vunpack.c.l.b16 %v1150
    %v1222 = vunpack.c.l.b16 %v1151
    %v1223 = vunpack.c.l.b16 %v1152
    %v1224 = vunpack.c.l.b16 %v1153
    %v1225 = vunpack.c.l.b16 %v1154
    %v1226 = vunpack.c.l.b16 %v1155
    %v1227 = vunpack.c.l.b16 %v1156
    %v1228 = vunpack.c.l.b16 %v1157
    %v1229 = vunpack.c.l.b16 %v1158
    %v1230 = vunpack.c.l.b16 %v1159
    %v1231 = vunpack.c.l.b16 %v1160
    %v1232 = vunpack.c.l.b16 %v1161
    %v1233 = vunpack.c.l.b16 %v1162
    %v1234 = vunpack.c.l.b16 %v1163
    %v1235 = vunpack.c.l.b16 %v1164
    %v1236 = vpack.c.b16 %v1205, %v1204
    %v1237 = vpack.c.b16 %v1207, %v1206
    %v1238 = vpack.c.b16 %v1209, %v1208
    %v1239 = vpack.c.b16 %v1211, %v1210
    %v1240 = vpack.c.b16 %v1213, %v1212
    %v1241 = vpack.c.b16 %v1215, %v1214
    %v1242 = vpack.c.b16 %v1217, %v1216
    %v1243 = vpack.c.b16 %v1219, %v1218
    %v1244 = vpack.c.b16 %v1221, %v1220
    %v1245 = vpack.c.b16 %v1223, %v1222
    %v1246 = vpack.c.b16 %v1225, %v1224
    %v1247 = vpack.c.b16 %v1227, %v1226
    %v1248 = vpack.c.b16 %v1229, %v1228
    %v1249 = vpack.c.b16 %v1231, %v1230
    %v1250 = vpack.c.b16 %v1233, %v1232
    %v1251 = vpack.c.b16 %v1235, %v1234
    %1268 = vmatprep.subr.bf16.mxu0 0
    %1269 = vmatpush1.bf16.msra.mxu0 %v1236
    %1270 = vmatprep.subr.bf16.mxu0 0
    %1271 = vmatpush1.bf16.msra.mxu0 %v1237
    %1272 = vmatprep.subr.bf16.mxu0 0
    %1273 = vmatpush1.bf16.msra.mxu0 %v1238
    %1274 = vmatprep.subr.bf16.mxu0 0
    %1275 = vmatpush1.bf16.msra.mxu0 %v1239
    %1276 = vmatprep.subr.bf16.mxu0 0
    %1277 = vmatpush1.bf16.msra.mxu0 %v1240
    %1278 = vmatprep.subr.bf16.mxu0 0
    %1279 = vmatpush1.bf16.msra.mxu0 %v1241
    %1280 = vmatprep.subr.bf16.mxu0 0
    %1281 = vmatpush1.bf16.msra.mxu0 %v1242
    %1282 = vmatprep.subr.bf16.mxu0 0
    %1283 = vmatpush1.bf16.msra.mxu0 %v1243
    %1284 = vmatprep.subr.bf16.mxu0 0
    %1285 = vmatpush1.bf16.msra.mxu0 %v1244
    %1286 = vmatprep.subr.bf16.mxu0 0
    %1287 = vmatpush1.bf16.msra.mxu0 %v1245
    %1288 = vmatprep.subr.bf16.mxu0 0
    %1289 = vmatpush1.bf16.msra.mxu0 %v1246
    %1290 = vmatprep.subr.bf16.mxu0 0
    %1291 = vmatpush1.bf16.msra.mxu0 %v1247
    %1292 = vmatprep.subr.bf16.mxu0 0
    %1293 = vmatpush1.bf16.msra.mxu0 %v1248
    %1294 = vmatprep.subr.bf16.mxu0 0
    %1295 = vmatpush1.bf16.msra.mxu0 %v1249
    %1296 = vmatprep.subr.bf16.mxu0 0
    %1297 = vmatpush1.bf16.msra.mxu0 %v1250
    %1298 = vmatprep.subr.bf16.mxu0 0
    %1299 = vmatpush1.bf16.msra.mxu0 %v1251
    %1300 = vmatprep.mubr.bf16.mxu0 %v1132
    %1301 = vmatmul.mubr.bf16.gmra.mrb[0].mxu0 %v1131
    %v1302 = vpop.f32.mrb[0].mxu0
    %v1303 = vadd.f32 %v1170, %v1302
    %v1304 = vpop.f32.mrb[0].mxu0
    %v1305 = vpop.f32.mrb[0].mxu0
    %v1306 = vadd.f32 %v1170, %v1305
    %v1307 = vpop.f32.mrb[0].mxu0
    %1308 = vdwg.mxu0
    %v1309 = vmax.f32 %v1303, 0.0
    %v1310 = vmax.f32 %v1306, 0.0
    %1311 = vst [vmem:[#allocation18] sm:$0xff] %v1309
    %1312 = vst [vmem:[#allocation18 + $0x8] sm:$0xff] %v1310
    %v1313 = vpack.c.bf16 %v1310, %v1309
    %v1314 = vld [vmem:[#allocation11] sm:$0xff]
    %v1315 = vld [vmem:[#allocation11 + $0x8] sm:$0xff]
    %v1316 = vld [vmem:[#allocation11 + $0x10] sm:$0xff]
    %v1317 = vld [vmem:[#allocation11 + $0x18] sm:$0xff]
    %v1318 = vld [vmem:[#allocation11 + $0x20] sm:$0xff]
    %v1319 = vld [vmem:[#allocation11 + $0x28] sm:$0xff]
    %v1320 = vld [vmem:[#allocation11 + $0x30] sm:$0xff]
    %v1321 = vld [vmem:[#allocation11 + $0x38] sm:$0xff]
    %v1322 = vld [vmem:[#allocation11 + $0x40] sm:$0xff]
    %v1323 = vld [vmem:[#allocation11 + $0x48] sm:$0xff]
    %v1324 = vld [vmem:[#allocation11 + $0x50] sm:$0xff]
    %v1325 = vld [vmem:[#allocation11 + $0x58] sm:$0xff]
    %v1326 = vld [vmem:[#allocation11 + $0x60] sm:$0xff]
    %v1327 = vld [vmem:[#allocation11 + $0x68] sm:$0xff]
    %v1328 = vld [vmem:[#allocation11 + $0x70] sm:$0xff]
    %v1329 = vld [vmem:[#allocation11 + $0x78] sm:$0xff]
    %v1330 = vld [vmem:[#allocation13] sm:$0x3]
    %v1332 = vlaneseq
    %v1333 = vshrl.u32 %v1332, 7
    %v1334 = vsub.s32 0, %v1333
    %v1335 = vrot.slane %v1330, %v1334
    %v1336 = vlaneseq
    %v1337 = vshrl.u32 %v1336, 7
    %v1338 = vsub.s32 1, %v1337
    %v1339 = vrot.slane %v1330, %v1338
    %v1358 = vunpack.c.l.b16 %v1314
    %v1359 = vunpack.c.h.b16 %v1314
    %v1360 = vunpack.c.l.b16 %v1315
    %v1361 = vunpack.c.h.b16 %v1315
    %v1362 = vunpack.c.l.b16 %v1316
    %v1363 = vunpack.c.h.b16 %v1316
    %v1364 = vunpack.c.l.b16 %v1317
    %v1365 = vunpack.c.h.b16 %v1317
    %v1366 = vunpack.c.l.b16 %v1318
    %v1367 = vunpack.c.h.b16 %v1318
    %v1368 = vunpack.c.l.b16 %v1319
    %v1369 = vunpack.c.h.b16 %v1319
    %v1370 = vunpack.c.l.b16 %v1320
    %v1371 = vunpack.c.h.b16 %v1320
    %v1372 = vunpack.c.l.b16 %v1321
    %v1373 = vunpack.c.h.b16 %v1321
    %v1374 = vunpack.c.l.b16 %v1322
    %v1375 = vunpack.c.h.b16 %v1322
    %v1376 = vunpack.c.l.b16 %v1323
    %v1377 = vunpack.c.h.b16 %v1323
    %v1378 = vunpack.c.l.b16 %v1324
    %v1379 = vunpack.c.h.b16 %v1324
    %v1380 = vunpack.c.l.b16 %v1325
    %v1381 = vunpack.c.h.b16 %v1325
    %v1382 = vunpack.c.l.b16 %v1326
    %v1383 = vunpack.c.h.b16 %v1326
    %v1384 = vunpack.c.l.b16 %v1327
    %v1385 = vunpack.c.h.b16 %v1327
    %v1386 = vunpack.c.l.b16 %v1328
    %v1387 = vunpack.c.h.b16 %v1328
    %v1388 = vunpack.c.l.b16 %v1329
    %v1389 = vunpack.c.h.b16 %v1329
    %v1390 = vpack.c.b16 %v1360, %v1358
    %v1391 = vpack.c.b16 %v1361, %v1359
    %v1392 = vpack.c.b16 %v1364, %v1362
    %v1393 = vpack.c.b16 %v1365, %v1363
    %v1394 = vpack.c.b16 %v1368, %v1366
    %v1395 = vpack.c.b16 %v1369, %v1367
    %v1396 = vpack.c.b16 %v1372, %v1370
    %v1397 = vpack.c.b16 %v1373, %v1371
    %v1398 = vpack.c.b16 %v1376, %v1374
    %v1399 = vpack.c.b16 %v1377, %v1375
    %v1400 = vpack.c.b16 %v1380, %v1378
    %v1401 = vpack.c.b16 %v1381, %v1379
    %v1402 = vpack.c.b16 %v1384, %v1382
    %v1403 = vpack.c.b16 %v1385, %v1383
    %v1404 = vpack.c.b16 %v1388, %v1386
    %v1405 = vpack.c.b16 %v1389, %v1387
    %1422 = vmatprep.subr.bf16.mxu0 %v1391
    %1423 = vmatpush1.bf16.msra.mxu0 %v1390
    %1424 = vmatprep.subr.bf16.mxu0 %v1393
    %1425 = vmatpush1.bf16.msra.mxu0 %v1392
    %1426 = vmatprep.subr.bf16.mxu0 %v1395
    %1427 = vmatpush1.bf16.msra.mxu0 %v1394
    %1428 = vmatprep.subr.bf16.mxu0 %v1397
    %1429 = vmatpush1.bf16.msra.mxu0 %v1396
    %1430 = vmatprep.subr.bf16.mxu0 %v1399
    %1431 = vmatpush1.bf16.msra.mxu0 %v1398
    %1432 = vmatprep.subr.bf16.mxu0 %v1401
    %1433 = vmatpush1.bf16.msra.mxu0 %v1400
    %1434 = vmatprep.subr.bf16.mxu0 %v1403
    %1435 = vmatpush1.bf16.msra.mxu0 %v1402
    %1436 = vmatprep.subr.bf16.mxu0 %v1405
    %1437 = vmatpush1.bf16.msra.mxu0 %v1404
    %1438 = vmatprep.subr.bf16.mxu0 0
    %1439 = vmatpush1.bf16.msra.mxu0 0
    %1440 = vmatprep.subr.bf16.mxu0 0
    %1441 = vmatpush1.bf16.msra.mxu0 0
    %1442 = vmatprep.subr.bf16.mxu0 0
    %1443 = vmatpush1.bf16.msra.mxu0 0
    %1444 = vmatprep.subr.bf16.mxu0 0
    %1445 = vmatpush1.bf16.msra.mxu0 0
    %1446 = vmatprep.subr.bf16.mxu0 0
    %1447 = vmatpush1.bf16.msra.mxu0 0
    %1448 = vmatprep.subr.bf16.mxu0 0
    %1449 = vmatpush1.bf16.msra.mxu0 0
    %1450 = vmatprep.subr.bf16.mxu0 0
    %1451 = vmatpush1.bf16.msra.mxu0 0
    %1452 = vmatprep.subr.bf16.mxu0 0
    %1453 = vmatpush1.bf16.msra.mxu0 0
    %1454 = vmatprep.mubr.bf16.mxu0 0
    %1455 = vmatmul.mubr.bf16.gmra.mrb[0].mxu0 %v1313
    %v1456 = vpop.f32.mrb[0].mxu0
    %v1457 = vadd.f32 %v1335, %v1456
    %v1458 = vpop.f32.mrb[0].mxu0
    %v1459 = vadd.f32 %v1339, %v1458
    %v1460 = vpop.f32.mrb[0].mxu0
    %v1461 = vadd.f32 %v1335, %v1460
    %v1462 = vpop.f32.mrb[0].mxu0
    %v1463 = vadd.f32 %v1339, %v1462
    %1464 = vdwg.mxu0
    %v1465 = vmax.f32 %v1457, 0.0
    %v1466 = vmax.f32 %v1459, 0.0
    %v1467 = vmax.f32 %v1461, 0.0
    %v1468 = vmax.f32 %v1463, 0.0
    %v1469 = vpack.c.bf16 %v1467, %v1465
    %v1470 = vpack.c.bf16 %v1468, %v1466
    %v1471 = vld [vmem:[#allocation14] sm:$0xff]
    %v1472 = vld [vmem:[#allocation14 + $0x8] sm:$0xff]
    %v1473 = vld [vmem:[#allocation14 + $0x10] sm:$0xff]
    %v1474 = vld [vmem:[#allocation14 + $0x18] sm:$0xff]
    %v1475 = vld [vmem:[#allocation14 + $0x20] sm:$0xff]
    %v1476 = vld [vmem:[#allocation14 + $0x28] sm:$0xff]
    %v1477 = vld [vmem:[#allocation14 + $0x30] sm:$0xff]
    %v1478 = vld [vmem:[#allocation14 + $0x38] sm:$0xff]
    %v1479 = vld [vmem:[#allocation14 + $0x40] sm:$0xff]
    %v1480 = vld [vmem:[#allocation14 + $0x48] sm:$0xff]
    %v1481 = vld [vmem:[#allocation14 + $0x50] sm:$0xff]
    %v1482 = vld [vmem:[#allocation14 + $0x58] sm:$0xff]
    %v1483 = vld [vmem:[#allocation14 + $0x60] sm:$0xff]
    %v1484 = vld [vmem:[#allocation14 + $0x68] sm:$0xff]
    %v1485 = vld [vmem:[#allocation14 + $0x70] sm:$0xff]
    %v1486 = vld [vmem:[#allocation14 + $0x78] sm:$0xff]
    %v1487 = vld [vmem:[#allocation14 + $0x80] sm:$0xff]
    %v1488 = vld [vmem:[#allocation14 + $0x88] sm:$0xff]
    %v1489 = vld [vmem:[#allocation14 + $0x90] sm:$0xff]
    %v1490 = vld [vmem:[#allocation14 + $0x98] sm:$0xff]
    %v1491 = vld [vmem:[#allocation14 + $0xa0] sm:$0xff]
    %v1492 = vld [vmem:[#allocation14 + $0xa8] sm:$0xff]
    %v1493 = vld [vmem:[#allocation14 + $0xb0] sm:$0xff]
    %v1494 = vld [vmem:[#allocation14 + $0xb8] sm:$0xff]
    %v1495 = vld [vmem:[#allocation14 + $0xc0] sm:$0xff]
    %v1496 = vld [vmem:[#allocation14 + $0xc8] sm:$0xff]
    %v1497 = vld [vmem:[#allocation14 + $0xd0] sm:$0xff]
    %v1498 = vld [vmem:[#allocation14 + $0xd8] sm:$0xff]
    %v1499 = vld [vmem:[#allocation14 + $0xe0] sm:$0xff]
    %v1500 = vld [vmem:[#allocation14 + $0xe8] sm:$0xff]
    %v1501 = vld [vmem:[#allocation14 + $0xf0] sm:$0xff]
    %v1502 = vld [vmem:[#allocation14 + $0xf8] sm:$0xff]
    %v1503 = vld [vmem:[#allocation14 + $0x100] sm:$0xff]
    %v1504 = vld [vmem:[#allocation14 + $0x108] sm:$0xff]
    %v1505 = vld [vmem:[#allocation14 + $0x110] sm:$0xff]
    %v1506 = vld [vmem:[#allocation14 + $0x118] sm:$0xff]
    %v1507 = vld [vmem:[#allocation14 + $0x120] sm:$0xff]
    %v1508 = vld [vmem:[#allocation14 + $0x128] sm:$0xff]
    %v1509 = vld [vmem:[#allocation14 + $0x130] sm:$0xff]
    %v1510 = vld [vmem:[#allocation14 + $0x138] sm:$0xff]
    %v1511 = vld [vmem:[#allocation14 + $0x140] sm:$0xff]
    %v1512 = vld [vmem:[#allocation14 + $0x148] sm:$0xff]
    %v1513 = vld [vmem:[#allocation14 + $0x150] sm:$0xff]
    %v1514 = vld [vmem:[#allocation14 + $0x158] sm:$0xff]
    %v1515 = vld [vmem:[#allocation14 + $0x160] sm:$0xff]
    %v1516 = vld [vmem:[#allocation14 + $0x168] sm:$0xff]
    %v1517 = vld [vmem:[#allocation14 + $0x170] sm:$0xff]
    %v1518 = vld [vmem:[#allocation14 + $0x178] sm:$0xff]
    %v1519 = vld [vmem:[#allocation14 + $0x180] sm:$0xff]
    %v1520 = vld [vmem:[#allocation14 + $0x188] sm:$0xff]
    %v1521 = vld [vmem:[#allocation14 + $0x190] sm:$0xff]
    %v1522 = vld [vmem:[#allocation14 + $0x198] sm:$0xff]
    %v1523 = vld [vmem:[#allocation14 + $0x1a0] sm:$0xff]
    %v1524 = vld [vmem:[#allocation14 + $0x1a8] sm:$0xff]
    %v1525 = vld [vmem:[#allocation14 + $0x1b0] sm:$0xff]
    %v1526 = vld [vmem:[#allocation14 + $0x1b8] sm:$0xff]
    %v1527 = vld [vmem:[#allocation14 + $0x1c0] sm:$0xff]
    %v1528 = vld [vmem:[#allocation14 + $0x1c8] sm:$0xff]
    %v1529 = vld [vmem:[#allocation14 + $0x1d0] sm:$0xff]
    %v1530 = vld [vmem:[#allocation14 + $0x1d8] sm:$0xff]
    %v1531 = vld [vmem:[#allocation14 + $0x1e0] sm:$0xff]
    %v1532 = vld [vmem:[#allocation14 + $0x1e8] sm:$0xff]
    %v1533 = vld [vmem:[#allocation14 + $0x1f0] sm:$0xff]
    %v1534 = vld [vmem:[#allocation14 + $0x1f8] sm:$0xff]
    %v1535 = vld [vmem:[#allocation14 + $0x200] sm:$0xff]
    %v1536 = vld [vmem:[#allocation14 + $0x208] sm:$0xff]
    %v1537 = vld [vmem:[#allocation14 + $0x210] sm:$0xff]
    %v1538 = vld [vmem:[#allocation14 + $0x218] sm:$0xff]
    %v1539 = vld [vmem:[#allocation14 + $0x220] sm:$0xff]
    %v1540 = vld [vmem:[#allocation14 + $0x228] sm:$0xff]
    %v1541 = vld [vmem:[#allocation14 + $0x230] sm:$0xff]
    %v1542 = vld [vmem:[#allocation14 + $0x238] sm:$0xff]
    %v1543 = vld [vmem:[#allocation14 + $0x240] sm:$0xff]
    %v1544 = vld [vmem:[#allocation14 + $0x248] sm:$0xff]
    %v1545 = vld [vmem:[#allocation14 + $0x250] sm:$0xff]
    %v1546 = vld [vmem:[#allocation14 + $0x258] sm:$0xff]
    %v1547 = vld [vmem:[#allocation14 + $0x260] sm:$0xff]
    %v1548 = vld [vmem:[#allocation14 + $0x268] sm:$0xff]
    %v1549 = vld [vmem:[#allocation14 + $0x270] sm:$0xff]
    %v1550 = vld [vmem:[#allocation14 + $0x278] sm:$0xff]
    %v1551 = vld [vmem:[#allocation14 + $0x280] sm:$0xff]
    %v1552 = vld [vmem:[#allocation14 + $0x288] sm:$0xff]
    %v1553 = vld [vmem:[#allocation14 + $0x290] sm:$0xff]
    %v1554 = vld [vmem:[#allocation14 + $0x298] sm:$0xff]
    %v1555 = vld [vmem:[#allocation14 + $0x2a0] sm:$0xff]
    %v1556 = vld [vmem:[#allocation14 + $0x2a8] sm:$0xff]
    %v1557 = vld [vmem:[#allocation14 + $0x2b0] sm:$0xff]
    %v1558 = vld [vmem:[#allocation14 + $0x2b8] sm:$0xff]
    %v1559 = vld [vmem:[#allocation14 + $0x2c0] sm:$0xff]
    %v1560 = vld [vmem:[#allocation14 + $0x2c8] sm:$0xff]
    %v1561 = vld [vmem:[#allocation14 + $0x2d0] sm:$0xff]
    %v1562 = vld [vmem:[#allocation14 + $0x2d8] sm:$0xff]
    %v1563 = vld [vmem:[#allocation14 + $0x2e0] sm:$0xff]
    %v1564 = vld [vmem:[#allocation14 + $0x2e8] sm:$0xff]
    %v1565 = vld [vmem:[#allocation14 + $0x2f0] sm:$0xff]
    %v1566 = vld [vmem:[#allocation14 + $0x2f8] sm:$0xff]
    %v1567 = vld [vmem:[#allocation14 + $0x300] sm:$0xff]
    %v1568 = vld [vmem:[#allocation14 + $0x308] sm:$0xff]
    %v1569 = vld [vmem:[#allocation14 + $0x310] sm:$0xff]
    %v1570 = vld [vmem:[#allocation14 + $0x318] sm:$0xff]
    %v1571 = vld [vmem:[#allocation14 + $0x320] sm:$0xff]
    %v1572 = vld [vmem:[#allocation14 + $0x328] sm:$0xff]
    %v1573 = vld [vmem:[#allocation14 + $0x330] sm:$0xff]
    %v1574 = vld [vmem:[#allocation14 + $0x338] sm:$0xff]
    %v1575 = vld [vmem:[#allocation14 + $0x340] sm:$0xff]
    %v1576 = vld [vmem:[#allocation14 + $0x348] sm:$0xff]
    %v1577 = vld [vmem:[#allocation14 + $0x350] sm:$0xff]
    %v1578 = vld [vmem:[#allocation14 + $0x358] sm:$0xff]
    %v1579 = vld [vmem:[#allocation14 + $0x360] sm:$0xff]
    %v1580 = vld [vmem:[#allocation14 + $0x368] sm:$0xff]
    %v1581 = vld [vmem:[#allocation14 + $0x370] sm:$0xff]
    %v1582 = vld [vmem:[#allocation14 + $0x378] sm:$0xff]
    %v1583 = vld [vmem:[#allocation14 + $0x380] sm:$0xff]
    %v1584 = vld [vmem:[#allocation14 + $0x388] sm:$0xff]
    %v1585 = vld [vmem:[#allocation14 + $0x390] sm:$0xff]
    %v1586 = vld [vmem:[#allocation14 + $0x398] sm:$0xff]
    %v1587 = vld [vmem:[#allocation14 + $0x3a0] sm:$0xff]
    %v1588 = vld [vmem:[#allocation14 + $0x3a8] sm:$0xff]
    %v1589 = vld [vmem:[#allocation14 + $0x3b0] sm:$0xff]
    %v1590 = vld [vmem:[#allocation14 + $0x3b8] sm:$0xff]
    %v1591 = vld [vmem:[#allocation14 + $0x3c0] sm:$0xff]
    %v1592 = vld [vmem:[#allocation14 + $0x3c8] sm:$0xff]
    %v1593 = vld [vmem:[#allocation14 + $0x3d0] sm:$0xff]
    %v1594 = vld [vmem:[#allocation14 + $0x3d8] sm:$0xff]
    %v1595 = vld [vmem:[#allocation14 + $0x3e0] sm:$0xff]
    %v1596 = vld [vmem:[#allocation14 + $0x3e8] sm:$0xff]
    %v1597 = vld [vmem:[#allocation14 + $0x3f0] sm:$0xff]
    %v1598 = vld [vmem:[#allocation14 + $0x3f8] sm:$0xff]
    %v1599 = vld [vmem:[#allocation16] sm:$0xff]
    %v1601 = vlaneseq
    %v1602 = vshrl.u32 %v1601, 7
    %v1603 = vsub.s32 0, %v1602
    %v1604 = vrot.slane %v1599, %v1603
    %v1605 = vlaneseq
    %v1606 = vshrl.u32 %v1605, 7
    %v1607 = vsub.s32 1, %v1606
    %v1608 = vrot.slane %v1599, %v1607
    %v1609 = vlaneseq
    %v1610 = vshrl.u32 %v1609, 7
    %v1611 = vsub.s32 2, %v1610
    %v1612 = vrot.slane %v1599, %v1611
    %v1613 = vlaneseq
    %v1614 = vshrl.u32 %v1613, 7
    %v1615 = vsub.s32 3, %v1614
    %v1616 = vrot.slane %v1599, %v1615
    %v1617 = vlaneseq
    %v1618 = vshrl.u32 %v1617, 7
    %v1619 = vsub.s32 4, %v1618
    %v1620 = vrot.slane %v1599, %v1619
    %v1621 = vlaneseq
    %v1622 = vshrl.u32 %v1621, 7
    %v1623 = vsub.s32 5, %v1622
    %v1624 = vrot.slane %v1599, %v1623
    %v1625 = vlaneseq
    %v1626 = vshrl.u32 %v1625, 7
    %v1627 = vsub.s32 6, %v1626
    %v1628 = vrot.slane %v1599, %v1627
    %v1629 = vlaneseq
    %v1630 = vshrl.u32 %v1629, 7
    %v1631 = vsub.s32 7, %v1630
    %v1632 = vrot.slane %v1599, %v1631
    %v1769 = vunpack.c.l.b16 %v1471
    %v1770 = vunpack.c.h.b16 %v1471
    %v1771 = vunpack.c.l.b16 %v1472
    %v1772 = vunpack.c.h.b16 %v1472
    %v1773 = vunpack.c.l.b16 %v1473
    %v1774 = vunpack.c.h.b16 %v1473
    %v1775 = vunpack.c.l.b16 %v1474
    %v1776 = vunpack.c.h.b16 %v1474
    %v1777 = vunpack.c.l.b16 %v1475
    %v1778 = vunpack.c.h.b16 %v1475
    %v1779 = vunpack.c.l.b16 %v1476
    %v1780 = vunpack.c.h.b16 %v1476
    %v1781 = vunpack.c.l.b16 %v1477
    %v1782 = vunpack.c.h.b16 %v1477
    %v1783 = vunpack.c.l.b16 %v1478
    %v1784 = vunpack.c.h.b16 %v1478
    %v1785 = vunpack.c.l.b16 %v1479
    %v1786 = vunpack.c.h.b16 %v1479
    %v1787 = vunpack.c.l.b16 %v1480
    %v1788 = vunpack.c.h.b16 %v1480
    %v1789 = vunpack.c.l.b16 %v1481
    %v1790 = vunpack.c.h.b16 %v1481
    %v1791 = vunpack.c.l.b16 %v1482
    %v1792 = vunpack.c.h.b16 %v1482
    %v1793 = vunpack.c.l.b16 %v1483
    %v1794 = vunpack.c.h.b16 %v1483
    %v1795 = vunpack.c.l.b16 %v1484
    %v1796 = vunpack.c.h.b16 %v1484
    %v1797 = vunpack.c.l.b16 %v1485
    %v1798 = vunpack.c.h.b16 %v1485
    %v1799 = vunpack.c.l.b16 %v1486
    %v1800 = vunpack.c.h.b16 %v1486
    %v1801 = vunpack.c.l.b16 %v1487
    %v1802 = vunpack.c.h.b16 %v1487
    %v1803 = vunpack.c.l.b16 %v1488
    %v1804 = vunpack.c.h.b16 %v1488
    %v1805 = vunpack.c.l.b16 %v1489
    %v1806 = vunpack.c.h.b16 %v1489
    %v1807 = vunpack.c.l.b16 %v1490
    %v1808 = vunpack.c.h.b16 %v1490
    %v1809 = vunpack.c.l.b16 %v1491
    %v1810 = vunpack.c.h.b16 %v1491
    %v1811 = vunpack.c.l.b16 %v1492
    %v1812 = vunpack.c.h.b16 %v1492
    %v1813 = vunpack.c.l.b16 %v1493
    %v1814 = vunpack.c.h.b16 %v1493
    %v1815 = vunpack.c.l.b16 %v1494
    %v1816 = vunpack.c.h.b16 %v1494
    %v1817 = vunpack.c.l.b16 %v1495
    %v1818 = vunpack.c.h.b16 %v1495
    %v1819 = vunpack.c.l.b16 %v1496
    %v1820 = vunpack.c.h.b16 %v1496
    %v1821 = vunpack.c.l.b16 %v1497
    %v1822 = vunpack.c.h.b16 %v1497
    %v1823 = vunpack.c.l.b16 %v1498
    %v1824 = vunpack.c.h.b16 %v1498
    %v1825 = vunpack.c.l.b16 %v1499
    %v1826 = vunpack.c.h.b16 %v1499
    %v1827 = vunpack.c.l.b16 %v1500
    %v1828 = vunpack.c.h.b16 %v1500
    %v1829 = vunpack.c.l.b16 %v1501
    %v1830 = vunpack.c.h.b16 %v1501
    %v1831 = vunpack.c.l.b16 %v1502
    %v1832 = vunpack.c.h.b16 %v1502
    %v1833 = vunpack.c.l.b16 %v1503
    %v1834 = vunpack.c.h.b16 %v1503
    %v1835 = vunpack.c.l.b16 %v1504
    %v1836 = vunpack.c.h.b16 %v1504
    %v1837 = vunpack.c.l.b16 %v1505
    %v1838 = vunpack.c.h.b16 %v1505
    %v1839 = vunpack.c.l.b16 %v1506
    %v1840 = vunpack.c.h.b16 %v1506
    %v1841 = vunpack.c.l.b16 %v1507
    %v1842 = vunpack.c.h.b16 %v1507
    %v1843 = vunpack.c.l.b16 %v1508
    %v1844 = vunpack.c.h.b16 %v1508
    %v1845 = vunpack.c.l.b16 %v1509
    %v1846 = vunpack.c.h.b16 %v1509
    %v1847 = vunpack.c.l.b16 %v1510
    %v1848 = vunpack.c.h.b16 %v1510
    %v1849 = vunpack.c.l.b16 %v1511
    %v1850 = vunpack.c.h.b16 %v1511
    %v1851 = vunpack.c.l.b16 %v1512
    %v1852 = vunpack.c.h.b16 %v1512
    %v1853 = vunpack.c.l.b16 %v1513
    %v1854 = vunpack.c.h.b16 %v1513
    %v1855 = vunpack.c.l.b16 %v1514
    %v1856 = vunpack.c.h.b16 %v1514
    %v1857 = vunpack.c.l.b16 %v1515
    %v1858 = vunpack.c.h.b16 %v1515
    %v1859 = vunpack.c.l.b16 %v1516
    %v1860 = vunpack.c.h.b16 %v1516
    %v1861 = vunpack.c.l.b16 %v1517
    %v1862 = vunpack.c.h.b16 %v1517
    %v1863 = vunpack.c.l.b16 %v1518
    %v1864 = vunpack.c.h.b16 %v1518
    %v1865 = vunpack.c.l.b16 %v1519
    %v1866 = vunpack.c.h.b16 %v1519
    %v1867 = vunpack.c.l.b16 %v1520
    %v1868 = vunpack.c.h.b16 %v1520
    %v1869 = vunpack.c.l.b16 %v1521
    %v1870 = vunpack.c.h.b16 %v1521
    %v1871 = vunpack.c.l.b16 %v1522
    %v1872 = vunpack.c.h.b16 %v1522
    %v1873 = vunpack.c.l.b16 %v1523
    %v1874 = vunpack.c.h.b16 %v1523
    %v1875 = vunpack.c.l.b16 %v1524
    %v1876 = vunpack.c.h.b16 %v1524
    %v1877 = vunpack.c.l.b16 %v1525
    %v1878 = vunpack.c.h.b16 %v1525
    %v1879 = vunpack.c.l.b16 %v1526
    %v1880 = vunpack.c.h.b16 %v1526
    %v1881 = vunpack.c.l.b16 %v1527
    %v1882 = vunpack.c.h.b16 %v1527
    %v1883 = vunpack.c.l.b16 %v1528
    %v1884 = vunpack.c.h.b16 %v1528
    %v1885 = vunpack.c.l.b16 %v1529
    %v1886 = vunpack.c.h.b16 %v1529
    %v1887 = vunpack.c.l.b16 %v1530
    %v1888 = vunpack.c.h.b16 %v1530
    %v1889 = vunpack.c.l.b16 %v1531
    %v1890 = vunpack.c.h.b16 %v1531
    %v1891 = vunpack.c.l.b16 %v1532
    %v1892 = vunpack.c.h.b16 %v1532
    %v1893 = vunpack.c.l.b16 %v1533
    %v1894 = vunpack.c.h.b16 %v1533
    %v1895 = vunpack.c.l.b16 %v1534
    %v1896 = vunpack.c.h.b16 %v1534
    %v1897 = vunpack.c.l.b16 %v1535
    %v1898 = vunpack.c.h.b16 %v1535
    %v1899 = vunpack.c.l.b16 %v1536
    %v1900 = vunpack.c.h.b16 %v1536
    %v1901 = vunpack.c.l.b16 %v1537
    %v1902 = vunpack.c.h.b16 %v1537
    %v1903 = vunpack.c.l.b16 %v1538
    %v1904 = vunpack.c.h.b16 %v1538
    %v1905 = vunpack.c.l.b16 %v1539
    %v1906 = vunpack.c.h.b16 %v1539
    %v1907 = vunpack.c.l.b16 %v1540
    %v1908 = vunpack.c.h.b16 %v1540
    %v1909 = vunpack.c.l.b16 %v1541
    %v1910 = vunpack.c.h.b16 %v1541
    %v1911 = vunpack.c.l.b16 %v1542
    %v1912 = vunpack.c.h.b16 %v1542
    %v1913 = vunpack.c.l.b16 %v1543
    %v1914 = vunpack.c.h.b16 %v1543
    %v1915 = vunpack.c.l.b16 %v1544
    %v1916 = vunpack.c.h.b16 %v1544
    %v1917 = vunpack.c.l.b16 %v1545
    %v1918 = vunpack.c.h.b16 %v1545
    %v1919 = vunpack.c.l.b16 %v1546
    %v1920 = vunpack.c.h.b16 %v1546
    %v1921 = vunpack.c.l.b16 %v1547
    %v1922 = vunpack.c.h.b16 %v1547
    %v1923 = vunpack.c.l.b16 %v1548
    %v1924 = vunpack.c.h.b16 %v1548
    %v1925 = vunpack.c.l.b16 %v1549
    %v1926 = vunpack.c.h.b16 %v1549
    %v1927 = vunpack.c.l.b16 %v1550
    %v1928 = vunpack.c.h.b16 %v1550
    %v1929 = vunpack.c.l.b16 %v1551
    %v1930 = vunpack.c.h.b16 %v1551
    %v1931 = vunpack.c.l.b16 %v1552
    %v1932 = vunpack.c.h.b16 %v1552
    %v1933 = vunpack.c.l.b16 %v1553
    %v1934 = vunpack.c.h.b16 %v1553
    %v1935 = vunpack.c.l.b16 %v1554
    %v1936 = vunpack.c.h.b16 %v1554
    %v1937 = vunpack.c.l.b16 %v1555
    %v1938 = vunpack.c.h.b16 %v1555
    %v1939 = vunpack.c.l.b16 %v1556
    %v1940 = vunpack.c.h.b16 %v1556
    %v1941 = vunpack.c.l.b16 %v1557
    %v1942 = vunpack.c.h.b16 %v1557
    %v1943 = vunpack.c.l.b16 %v1558
    %v1944 = vunpack.c.h.b16 %v1558
    %v1945 = vunpack.c.l.b16 %v1559
    %v1946 = vunpack.c.h.b16 %v1559
    %v1947 = vunpack.c.l.b16 %v1560
    %v1948 = vunpack.c.h.b16 %v1560
    %v1949 = vunpack.c.l.b16 %v1561
    %v1950 = vunpack.c.h.b16 %v1561
    %v1951 = vunpack.c.l.b16 %v1562
    %v1952 = vunpack.c.h.b16 %v1562
    %v1953 = vunpack.c.l.b16 %v1563
    %v1954 = vunpack.c.h.b16 %v1563
    %v1955 = vunpack.c.l.b16 %v1564
    %v1956 = vunpack.c.h.b16 %v1564
    %v1957 = vunpack.c.l.b16 %v1565
    %v1958 = vunpack.c.h.b16 %v1565
    %v1959 = vunpack.c.l.b16 %v1566
    %v1960 = vunpack.c.h.b16 %v1566
    %v1961 = vunpack.c.l.b16 %v1567
    %v1962 = vunpack.c.h.b16 %v1567
    %v1963 = vunpack.c.l.b16 %v1568
    %v1964 = vunpack.c.h.b16 %v1568
    %v1965 = vunpack.c.l.b16 %v1569
    %v1966 = vunpack.c.h.b16 %v1569
    %v1967 = vunpack.c.l.b16 %v1570
    %v1968 = vunpack.c.h.b16 %v1570
    %v1969 = vunpack.c.l.b16 %v1571
    %v1970 = vunpack.c.h.b16 %v1571
    %v1971 = vunpack.c.l.b16 %v1572
    %v1972 = vunpack.c.h.b16 %v1572
    %v1973 = vunpack.c.l.b16 %v1573
    %v1974 = vunpack.c.h.b16 %v1573
    %v1975 = vunpack.c.l.b16 %v1574
    %v1976 = vunpack.c.h.b16 %v1574
    %v1977 = vunpack.c.l.b16 %v1575
    %v1978 = vunpack.c.h.b16 %v1575
    %v1979 = vunpack.c.l.b16 %v1576
    %v1980 = vunpack.c.h.b16 %v1576
    %v1981 = vunpack.c.l.b16 %v1577
    %v1982 = vunpack.c.h.b16 %v1577
    %v1983 = vunpack.c.l.b16 %v1578
    %v1984 = vunpack.c.h.b16 %v1578
    %v1985 = vunpack.c.l.b16 %v1579
    %v1986 = vunpack.c.h.b16 %v1579
    %v1987 = vunpack.c.l.b16 %v1580
    %v1988 = vunpack.c.h.b16 %v1580
    %v1989 = vunpack.c.l.b16 %v1581
    %v1990 = vunpack.c.h.b16 %v1581
    %v1991 = vunpack.c.l.b16 %v1582
    %v1992 = vunpack.c.h.b16 %v1582
    %v1993 = vunpack.c.l.b16 %v1583
    %v1994 = vunpack.c.h.b16 %v1583
    %v1995 = vunpack.c.l.b16 %v1584
    %v1996 = vunpack.c.h.b16 %v1584
    %v1997 = vunpack.c.l.b16 %v1585
    %v1998 = vunpack.c.h.b16 %v1585
    %v1999 = vunpack.c.l.b16 %v1586
    %v2000 = vunpack.c.h.b16 %v1586
    %v2001 = vunpack.c.l.b16 %v1587
    %v2002 = vunpack.c.h.b16 %v1587
    %v2003 = vunpack.c.l.b16 %v1588
    %v2004 = vunpack.c.h.b16 %v1588
    %v2005 = vunpack.c.l.b16 %v1589
    %v2006 = vunpack.c.h.b16 %v1589
    %v2007 = vunpack.c.l.b16 %v1590
    %v2008 = vunpack.c.h.b16 %v1590
    %v2009 = vunpack.c.l.b16 %v1591
    %v2010 = vunpack.c.h.b16 %v1591
    %v2011 = vunpack.c.l.b16 %v1592
    %v2012 = vunpack.c.h.b16 %v1592
    %v2013 = vunpack.c.l.b16 %v1593
    %v2014 = vunpack.c.h.b16 %v1593
    %v2015 = vunpack.c.l.b16 %v1594
    %v2016 = vunpack.c.h.b16 %v1594
    %v2017 = vunpack.c.l.b16 %v1595
    %v2018 = vunpack.c.h.b16 %v1595
    %v2019 = vunpack.c.l.b16 %v1596
    %v2020 = vunpack.c.h.b16 %v1596
    %v2021 = vunpack.c.l.b16 %v1597
    %v2022 = vunpack.c.h.b16 %v1597
    %v2023 = vunpack.c.l.b16 %v1598
    %v2024 = vunpack.c.h.b16 %v1598
    %v2025 = vpack.c.b16 %v1777, %v1769
    %v2026 = vpack.c.b16 %v1778, %v1770
    %v2027 = vpack.c.b16 %v1779, %v1771
    %v2028 = vpack.c.b16 %v1780, %v1772
    %v2029 = vpack.c.b16 %v1781, %v1773
    %v2030 = vpack.c.b16 %v1782, %v1774
    %v2031 = vpack.c.b16 %v1783, %v1775
    %v2032 = vpack.c.b16 %v1784, %v1776
    %v2033 = vpack.c.b16 %v1793, %v1785
    %v2034 = vpack.c.b16 %v1794, %v1786
    %v2035 = vpack.c.b16 %v1795, %v1787
    %v2036 = vpack.c.b16 %v1796, %v1788
    %v2037 = vpack.c.b16 %v1797, %v1789
    %v2038 = vpack.c.b16 %v1798, %v1790
    %v2039 = vpack.c.b16 %v1799, %v1791
    %v2040 = vpack.c.b16 %v1800, %v1792
    %v2041 = vpack.c.b16 %v1809, %v1801
    %v2042 = vpack.c.b16 %v1810, %v1802
    %v2043 = vpack.c.b16 %v1811, %v1803
    %v2044 = vpack.c.b16 %v1812, %v1804
    %v2045 = vpack.c.b16 %v1813, %v1805
    %v2046 = vpack.c.b16 %v1814, %v1806
    %v2047 = vpack.c.b16 %v1815, %v1807
    %v2048 = vpack.c.b16 %v1816, %v1808
    %v2049 = vpack.c.b16 %v1825, %v1817
    %v2050 = vpack.c.b16 %v1826, %v1818
    %v2051 = vpack.c.b16 %v1827, %v1819
    %v2052 = vpack.c.b16 %v1828, %v1820
    %v2053 = vpack.c.b16 %v1829, %v1821
    %v2054 = vpack.c.b16 %v1830, %v1822
    %v2055 = vpack.c.b16 %v1831, %v1823
    %v2056 = vpack.c.b16 %v1832, %v1824
    %v2057 = vpack.c.b16 %v1841, %v1833
    %v2058 = vpack.c.b16 %v1842, %v1834
    %v2059 = vpack.c.b16 %v1843, %v1835
    %v2060 = vpack.c.b16 %v1844, %v1836
    %v2061 = vpack.c.b16 %v1845, %v1837
    %v2062 = vpack.c.b16 %v1846, %v1838
    %v2063 = vpack.c.b16 %v1847, %v1839
    %v2064 = vpack.c.b16 %v1848, %v1840
    %v2065 = vpack.c.b16 %v1857, %v1849
    %v2066 = vpack.c.b16 %v1858, %v1850
    %v2067 = vpack.c.b16 %v1859, %v1851
    %v2068 = vpack.c.b16 %v1860, %v1852
    %v2069 = vpack.c.b16 %v1861, %v1853
    %v2070 = vpack.c.b16 %v1862, %v1854
    %v2071 = vpack.c.b16 %v1863, %v1855
    %v2072 = vpack.c.b16 %v1864, %v1856
    %v2073 = vpack.c.b16 %v1873, %v1865
    %v2074 = vpack.c.b16 %v1874, %v1866
    %v2075 = vpack.c.b16 %v1875, %v1867
    %v2076 = vpack.c.b16 %v1876, %v1868
    %v2077 = vpack.c.b16 %v1877, %v1869
    %v2078 = vpack.c.b16 %v1878, %v1870
    %v2079 = vpack.c.b16 %v1879, %v1871
    %v2080 = vpack.c.b16 %v1880, %v1872
    %v2081 = vpack.c.b16 %v1889, %v1881
    %v2082 = vpack.c.b16 %v1890, %v1882
    %v2083 = vpack.c.b16 %v1891, %v1883
    %v2084 = vpack.c.b16 %v1892, %v1884
    %v2085 = vpack.c.b16 %v1893, %v1885
    %v2086 = vpack.c.b16 %v1894, %v1886
    %v2087 = vpack.c.b16 %v1895, %v1887
    %v2088 = vpack.c.b16 %v1896, %v1888
    %v2089 = vpack.c.b16 %v1905, %v1897
    %v2090 = vpack.c.b16 %v1906, %v1898
    %v2091 = vpack.c.b16 %v1907, %v1899
    %v2092 = vpack.c.b16 %v1908, %v1900
    %v2093 = vpack.c.b16 %v1909, %v1901
    %v2094 = vpack.c.b16 %v1910, %v1902
    %v2095 = vpack.c.b16 %v1911, %v1903
    %v2096 = vpack.c.b16 %v1912, %v1904
    %v2097 = vpack.c.b16 %v1921, %v1913
    %v2098 = vpack.c.b16 %v1922, %v1914
    %v2099 = vpack.c.b16 %v1923, %v1915
    %v2100 = vpack.c.b16 %v1924, %v1916
    %v2101 = vpack.c.b16 %v1925, %v1917
    %v2102 = vpack.c.b16 %v1926, %v1918
    %v2103 = vpack.c.b16 %v1927, %v1919
    %v2104 = vpack.c.b16 %v1928, %v1920
    %v2105 = vpack.c.b16 %v1937, %v1929
    %v2106 = vpack.c.b16 %v1938, %v1930
    %v2107 = vpack.c.b16 %v1939, %v1931
    %v2108 = vpack.c.b16 %v1940, %v1932
    %v2109 = vpack.c.b16 %v1941, %v1933
    %v2110 = vpack.c.b16 %v1942, %v1934
    %v2111 = vpack.c.b16 %v1943, %v1935
    %v2112 = vpack.c.b16 %v1944, %v1936
    %v2113 = vpack.c.b16 %v1953, %v1945
    %v2114 = vpack.c.b16 %v1954, %v1946
    %v2115 = vpack.c.b16 %v1955, %v1947
    %v2116 = vpack.c.b16 %v1956, %v1948
    %v2117 = vpack.c.b16 %v1957, %v1949
    %v2118 = vpack.c.b16 %v1958, %v1950
    %v2119 = vpack.c.b16 %v1959, %v1951
    %v2120 = vpack.c.b16 %v1960, %v1952
    %v2121 = vpack.c.b16 %v1969, %v1961
    %v2122 = vpack.c.b16 %v1970, %v1962
    %v2123 = vpack.c.b16 %v1971, %v1963
    %v2124 = vpack.c.b16 %v1972, %v1964
    %v2125 = vpack.c.b16 %v1973, %v1965
    %v2126 = vpack.c.b16 %v1974, %v1966
    %v2127 = vpack.c.b16 %v1975, %v1967
    %v2128 = vpack.c.b16 %v1976, %v1968
    %v2129 = vpack.c.b16 %v1985, %v1977
    %v2130 = vpack.c.b16 %v1986, %v1978
    %v2131 = vpack.c.b16 %v1987, %v1979
    %v2132 = vpack.c.b16 %v1988, %v1980
    %v2133 = vpack.c.b16 %v1989, %v1981
    %v2134 = vpack.c.b16 %v1990, %v1982
    %v2135 = vpack.c.b16 %v1991, %v1983
    %v2136 = vpack.c.b16 %v1992, %v1984
    %v2137 = vpack.c.b16 %v2001, %v1993
    %v2138 = vpack.c.b16 %v2002, %v1994
    %v2139 = vpack.c.b16 %v2003, %v1995
    %v2140 = vpack.c.b16 %v2004, %v1996
    %v2141 = vpack.c.b16 %v2005, %v1997
    %v2142 = vpack.c.b16 %v2006, %v1998
    %v2143 = vpack.c.b16 %v2007, %v1999
    %v2144 = vpack.c.b16 %v2008, %v2000
    %v2145 = vpack.c.b16 %v2017, %v2009
    %v2146 = vpack.c.b16 %v2018, %v2010
    %v2147 = vpack.c.b16 %v2019, %v2011
    %v2148 = vpack.c.b16 %v2020, %v2012
    %v2149 = vpack.c.b16 %v2021, %v2013
    %v2150 = vpack.c.b16 %v2022, %v2014
    %v2151 = vpack.c.b16 %v2023, %v2015
    %v2152 = vpack.c.b16 %v2024, %v2016
    %2281 = vmatprep.subr.bf16.mxu0 %v2026
    %2282 = vmatpush1.bf16.msra.mxu0 %v2025
    %2283 = vmatprep.subr.bf16.mxu0 %v2034
    %2284 = vmatpush1.bf16.msra.mxu0 %v2033
    %2285 = vmatprep.subr.bf16.mxu0 %v2042
    %2286 = vmatpush1.bf16.msra.mxu0 %v2041
    %2287 = vmatprep.subr.bf16.mxu0 %v2050
    %2288 = vmatpush1.bf16.msra.mxu0 %v2049
    %2289 = vmatprep.subr.bf16.mxu0 %v2058
    %2290 = vmatpush1.bf16.msra.mxu0 %v2057
    %2291 = vmatprep.subr.bf16.mxu0 %v2066
    %2292 = vmatpush1.bf16.msra.mxu0 %v2065
    %2293 = vmatprep.subr.bf16.mxu0 %v2074
    %2294 = vmatpush1.bf16.msra.mxu0 %v2073
    %2295 = vmatprep.subr.bf16.mxu0 %v2082
    %2296 = vmatpush1.bf16.msra.mxu0 %v2081
    %2297 = vmatprep.subr.bf16.mxu0 %v2090
    %2298 = vmatpush1.bf16.msra.mxu0 %v2089
    %2299 = vmatprep.subr.bf16.mxu0 %v2098
    %2300 = vmatpush1.bf16.msra.mxu0 %v2097
    %2301 = vmatprep.subr.bf16.mxu0 %v2106
    %2302 = vmatpush1.bf16.msra.mxu0 %v2105
    %2303 = vmatprep.subr.bf16.mxu0 %v2114
    %2304 = vmatpush1.bf16.msra.mxu0 %v2113
    %2305 = vmatprep.subr.bf16.mxu0 %v2122
    %2306 = vmatpush1.bf16.msra.mxu0 %v2121
    %2307 = vmatprep.subr.bf16.mxu0 %v2130
    %2308 = vmatpush1.bf16.msra.mxu0 %v2129
    %2309 = vmatprep.subr.bf16.mxu0 %v2138
    %2310 = vmatpush1.bf16.msra.mxu0 %v2137
    %2311 = vmatprep.subr.bf16.mxu0 %v2146
    %2312 = vmatpush1.bf16.msra.mxu0 %v2145
    %2313 = vmatprep.mubr.bf16.mxu0 %v1470
    %2314 = vmatmul.mubr.bf16.gmra.mrb[0].mxu0 %v1469
    %v2315 = vpop.f32.mrb[0].mxu0
    %v2316 = vadd.f32 %v1604, %v2315
    %v2317 = vpop.f32.mrb[0].mxu0
    %v2318 = vadd.f32 %v1608, %v2317
    %v2319 = vpop.f32.mrb[0].mxu0
    %v2320 = vadd.f32 %v1604, %v2319
    %v2321 = vpop.f32.mrb[0].mxu0
    %v2322 = vadd.f32 %v1608, %v2321
    %2323 = vdwg.mxu0
    %2324 = vmatprep.subr.bf16.mxu0 %v2028
    %2325 = vmatpush1.bf16.msra.mxu0 %v2027
    %2326 = vmatprep.subr.bf16.mxu0 %v2036
    %2327 = vmatpush1.bf16.msra.mxu0 %v2035
    %2328 = vmatprep.subr.bf16.mxu0 %v2044
    %2329 = vmatpush1.bf16.msra.mxu0 %v2043
    %2330 = vmatprep.subr.bf16.mxu0 %v2052
    %2331 = vmatpush1.bf16.msra.mxu0 %v2051
    %2332 = vmatprep.subr.bf16.mxu0 %v2060
    %2333 = vmatpush1.bf16.msra.mxu0 %v2059
    %2334 = vmatprep.subr.bf16.mxu0 %v2068
    %2335 = vmatpush1.bf16.msra.mxu0 %v2067
    %2336 = vmatprep.subr.bf16.mxu0 %v2076
    %2337 = vmatpush1.bf16.msra.mxu0 %v2075
    %2338 = vmatprep.subr.bf16.mxu0 %v2084
    %2339 = vmatpush1.bf16.msra.mxu0 %v2083
    %2340 = vmatprep.subr.bf16.mxu0 %v2092
    %2341 = vmatpush1.bf16.msra.mxu0 %v2091
    %2342 = vmatprep.subr.bf16.mxu0 %v2100
    %2343 = vmatpush1.bf16.msra.mxu0 %v2099
    %2344 = vmatprep.subr.bf16.mxu0 %v2108
    %2345 = vmatpush1.bf16.msra.mxu0 %v2107
    %2346 = vmatprep.subr.bf16.mxu0 %v2116
    %2347 = vmatpush1.bf16.msra.mxu0 %v2115
    %2348 = vmatprep.subr.bf16.mxu0 %v2124
    %2349 = vmatpush1.bf16.msra.mxu0 %v2123
    %2350 = vmatprep.subr.bf16.mxu0 %v2132
    %2351 = vmatpush1.bf16.msra.mxu0 %v2131
    %2352 = vmatprep.subr.bf16.mxu0 %v2140
    %2353 = vmatpush1.bf16.msra.mxu0 %v2139
    %2354 = vmatprep.subr.bf16.mxu0 %v2148
    %2355 = vmatpush1.bf16.msra.mxu0 %v2147
    %2356 = vmatprep.mubr.bf16.mxu0 %v1470
    %2357 = vmatmul.mubr.bf16.gmra.mrb[0].mxu0 %v1469
    %v2358 = vpop.f32.mrb[0].mxu0
    %v2359 = vadd.f32 %v1612, %v2358
    %v2360 = vpop.f32.mrb[0].mxu0
    %v2361 = vadd.f32 %v1616, %v2360
    %v2362 = vpop.f32.mrb[0].mxu0
    %v2363 = vadd.f32 %v1612, %v2362
    %v2364 = vpop.f32.mrb[0].mxu0
    %v2365 = vadd.f32 %v1616, %v2364
    %2366 = vdwg.mxu0
    %2367 = vmatprep.subr.bf16.mxu0 %v2030
    %2368 = vmatpush1.bf16.msra.mxu0 %v2029
    %2369 = vmatprep.subr.bf16.mxu0 %v2038
    %2370 = vmatpush1.bf16.msra.mxu0 %v2037
    %2371 = vmatprep.subr.bf16.mxu0 %v2046
    %2372 = vmatpush1.bf16.msra.mxu0 %v2045
    %2373 = vmatprep.subr.bf16.mxu0 %v2054
    %2374 = vmatpush1.bf16.msra.mxu0 %v2053
    %2375 = vmatprep.subr.bf16.mxu0 %v2062
    %2376 = vmatpush1.bf16.msra.mxu0 %v2061
    %2377 = vmatprep.subr.bf16.mxu0 %v2070
    %2378 = vmatpush1.bf16.msra.mxu0 %v2069
    %2379 = vmatprep.subr.bf16.mxu0 %v2078
    %2380 = vmatpush1.bf16.msra.mxu0 %v2077
    %2381 = vmatprep.subr.bf16.mxu0 %v2086
    %2382 = vmatpush1.bf16.msra.mxu0 %v2085
    %2383 = vmatprep.subr.bf16.mxu0 %v2094
    %2384 = vmatpush1.bf16.msra.mxu0 %v2093
    %2385 = vmatprep.subr.bf16.mxu0 %v2102
    %2386 = vmatpush1.bf16.msra.mxu0 %v2101
    %2387 = vmatprep.subr.bf16.mxu0 %v2110
    %2388 = vmatpush1.bf16.msra.mxu0 %v2109
    %2389 = vmatprep.subr.bf16.mxu0 %v2118
    %2390 = vmatpush1.bf16.msra.mxu0 %v2117
    %2391 = vmatprep.subr.bf16.mxu0 %v2126
    %2392 = vmatpush1.bf16.msra.mxu0 %v2125
    %2393 = vmatprep.subr.bf16.mxu0 %v2134
    %2394 = vmatpush1.bf16.msra.mxu0 %v2133
    %2395 = vmatprep.subr.bf16.mxu0 %v2142
    %2396 = vmatpush1.bf16.msra.mxu0 %v2141
    %2397 = vmatprep.subr.bf16.mxu0 %v2150
    %2398 = vmatpush1.bf16.msra.mxu0 %v2149
    %2399 = vmatprep.mubr.bf16.mxu0 %v1470
    %2400 = vmatmul.mubr.bf16.gmra.mrb[0].mxu0 %v1469
    %v2401 = vpop.f32.mrb[0].mxu0
    %v2402 = vadd.f32 %v1620, %v2401
    %v2403 = vpop.f32.mrb[0].mxu0
    %v2404 = vadd.f32 %v1624, %v2403
    %v2405 = vpop.f32.mrb[0].mxu0
    %v2406 = vadd.f32 %v1620, %v2405
    %v2407 = vpop.f32.mrb[0].mxu0
    %v2408 = vadd.f32 %v1624, %v2407
    %2409 = vdwg.mxu0
    %2410 = vmatprep.subr.bf16.mxu0 %v2032
    %2411 = vmatpush1.bf16.msra.mxu0 %v2031
    %2412 = vmatprep.subr.bf16.mxu0 %v2040
    %2413 = vmatpush1.bf16.msra.mxu0 %v2039
    %2414 = vmatprep.subr.bf16.mxu0 %v2048
    %2415 = vmatpush1.bf16.msra.mxu0 %v2047
    %2416 = vmatprep.subr.bf16.mxu0 %v2056
    %2417 = vmatpush1.bf16.msra.mxu0 %v2055
    %2418 = vmatprep.subr.bf16.mxu0 %v2064
    %2419 = vmatpush1.bf16.msra.mxu0 %v2063
    %2420 = vmatprep.subr.bf16.mxu0 %v2072
    %2421 = vmatpush1.bf16.msra.mxu0 %v2071
    %2422 = vmatprep.subr.bf16.mxu0 %v2080
    %2423 = vmatpush1.bf16.msra.mxu0 %v2079
    %2424 = vmatprep.subr.bf16.mxu0 %v2088
    %2425 = vmatpush1.bf16.msra.mxu0 %v2087
    %2426 = vmatprep.subr.bf16.mxu0 %v2096
    %2427 = vmatpush1.bf16.msra.mxu0 %v2095
    %2428 = vmatprep.subr.bf16.mxu0 %v2104
    %2429 = vmatpush1.bf16.msra.mxu0 %v2103
    %2430 = vmatprep.subr.bf16.mxu0 %v2112
    %2431 = vmatpush1.bf16.msra.mxu0 %v2111
    %2432 = vmatprep.subr.bf16.mxu0 %v2120
    %2433 = vmatpush1.bf16.msra.mxu0 %v2119
    %2434 = vmatprep.subr.bf16.mxu0 %v2128
    %2435 = vmatpush1.bf16.msra.mxu0 %v2127
    %2436 = vmatprep.subr.bf16.mxu0 %v2136
    %2437 = vmatpush1.bf16.msra.mxu0 %v2135
    %2438 = vmatprep.subr.bf16.mxu0 %v2144
    %2439 = vmatpush1.bf16.msra.mxu0 %v2143
    %2440 = vmatprep.subr.bf16.mxu0 %v2152
    %2441 = vmatpush1.bf16.msra.mxu0 %v2151
    %2442 = vmatprep.mubr.bf16.mxu0 %v1470
    %2443 = vmatmul.mubr.bf16.gmra.mrb[0].mxu0 %v1469
    %v2444 = vpop.f32.mrb[0].mxu0
    %v2445 = vadd.f32 %v1628, %v2444
    %v2446 = vpop.f32.mrb[0].mxu0
    %v2447 = vadd.f32 %v1632, %v2446
    %v2448 = vpop.f32.mrb[0].mxu0
    %v2449 = vadd.f32 %v1628, %v2448
    %v2450 = vpop.f32.mrb[0].mxu0
    %v2451 = vadd.f32 %v1632, %v2450
    %2452 = vdwg.mxu0
    %2453 = vst [vmem:[#allocation17] sm:$0xff] %v2316
    %2454 = vst [vmem:[#allocation17 + $0x8] sm:$0xff] %v2318
    %2455 = vst [vmem:[#allocation17 + $0x10] sm:$0xff] %v2359
    %2456 = vst [vmem:[#allocation17 + $0x18] sm:$0xff] %v2361
    %2457 = vst [vmem:[#allocation17 + $0x20] sm:$0xff] %v2402
    %2458 = vst [vmem:[#allocation17 + $0x28] sm:$0xff] %v2404
    %2459 = vst [vmem:[#allocation17 + $0x30] sm:$0xff] %v2445
    %2460 = vst [vmem:[#allocation17 + $0x38] sm:$0xff] %v2447
    %2461 = vst [vmem:[#allocation17 + $0x40] sm:$0xff] %v2320
    %2462 = vst [vmem:[#allocation17 + $0x48] sm:$0xff] %v2322
    %2463 = vst [vmem:[#allocation17 + $0x50] sm:$0xff] %v2363
    %2464 = vst [vmem:[#allocation17 + $0x58] sm:$0xff] %v2365
    %2465 = vst [vmem:[#allocation17 + $0x60] sm:$0xff] %v2406
    %2466 = vst [vmem:[#allocation17 + $0x68] sm:$0xff] %v2408
    %2467 = vst [vmem:[#allocation17 + $0x70] sm:$0xff] %v2449
    %2468 = vst [vmem:[#allocation17 + $0x78] sm:$0xff] %v2451
    // Predicated region
    $region74: #{sparse_autoencoder_forward.1} parent=1 // pred_check
      _
    $region75: #{sparse_autoencoder_forward.1} parent=1 // pred_check_branch
      %2470 = sbr.rel (0) target = $region77
    $region76: #{sparse_autoencoder_forward.1} parent=1 // pred_region
      %s2472 = ssub.s32 2048, 2048
      %2473 = vsyncadd [#allocation4], %s2472
      %s2474 = sshll.u32 [#allocation17], 4
      %s2475 = int_to_ptr.vmem [resolvable:$true] %s2474
      %2480 = dma.vmem_to_hbm [thread:$0]  %s2475, 2048, %s9, [#allocation4], 1024, 1024, 64
    $region77: #{sparse_autoencoder_forward.1} parent=1 // pred_fallthru
      _
    // Predicated region
    $region78: #{sparse_autoencoder_forward.1} parent=1 // pred_check
      _
    $region79: #{sparse_autoencoder_forward.1} parent=1 // pred_check_branch
      %2482 = sbr.rel (0) target = $region81
    $region80: #{sparse_autoencoder_forward.1} parent=1 // pred_region
      %s2484 = ssub.s32 256, 256
      %2485 = vsyncadd [#allocation19], %s2484
      %s2486 = sshll.u32 [#allocation18], 4
      %s2487 = int_to_ptr.vmem [resolvable:$true] %s2486
      %2492 = dma.vmem_to_hbm [thread:$0]  %s2487, 256, %s10, [#allocation19], 128, 128, 8
    $region81: #{sparse_autoencoder_forward.1} parent=1 // pred_fallthru
      _
    // Predicated region
    $region82: #{sparse_autoencoder_forward.1} parent=1 // pred_check
      _
    $region83: #{sparse_autoencoder_forward.1} parent=1 // pred_check_branch
      %2494 = sbr.rel (0) target = $region85
    $region84: #{sparse_autoencoder_forward.1} parent=1 // pred_region
      %2495 = dma.done [#allocation4], 2048
    $region85: #{sparse_autoencoder_forward.1} parent=1 // pred_fallthru
      _
    // Predicated region
    $region86: #{sparse_autoencoder_forward.1} parent=1 // pred_check
      _
    $region87: #{sparse_autoencoder_forward.1} parent=1 // pred_check_branch
      %2497 = sbr.rel (0) target = $region89
    $region88: #{sparse_autoencoder_forward.1} parent=1 // pred_region
      %2498 = dma.done [#allocation19], 256
    $region89: #{sparse_autoencoder_forward.1} parent=1 // pred_fallthru
      _
    %2499 = vsyncpa [#allocation3], 1
    %2500 = vsyncpa [#allocation6], 1
    %2501 = vsyncpa [#allocation9], 1
    %2502 = vsyncpa [#allocation12], 1
    %2503 = vsyncpa [#allocation15], 1
    %2504 = vsyncpa [#allocation4], 1
    %2505 = vsyncpa [#allocation19], 1

</llo_original>
